<compile_context>
chip_gen: v5e
topology: v5e:2x2
jax: 0.10.0
libtpu: 0.0.40
codegen_flags: <defaults>
</compile_context>

<pallas_src>
import math
from functools import partial

import jax
import jax.numpy as jnp
from jax.experimental import pallas as pl
from jax.experimental.pallas import tpu as pltpu  # noqa: F401  (vmem_limit / Buffered would be set here at real BERT scale)


LN_EPS = 1e-12
MASK_VALUE = -10000.0


# ----------------------------------------------------------------------------
# Helpers (pure jnp; usable both inside Pallas kernels and as XLA glue)
# ----------------------------------------------------------------------------
def _ln(x, g, b, eps=LN_EPS):
    mean = jnp.mean(x, axis=-1, keepdims=True)
    var = jnp.mean(jnp.square(x - mean), axis=-1, keepdims=True)
    return (x - mean) * jax.lax.rsqrt(var + eps) * g + b


def _gelu_exact(x):
    # exact (erf-based) GELU, matching BERT
    return 0.5 * x * (1.0 + jax.lax.erf(x * (1.0 / math.sqrt(2.0))))


# ----------------------------------------------------------------------------
# Fully fused BERT encoder layer (all batch elements in one kernel invocation)
#   x_ref    : [B*S, H] fp32 residual stream
#   mask_ref : [B, 1, S] fp32 additive attention bias
#   weights  : bf16 (MXU inputs), biases / LN params fp32
# Optionally applies the embedding LayerNorm first (fused into layer 0).
# ----------------------------------------------------------------------------
def _encoder_layer_kernel(
    x_ref, mask_ref, inln_g_ref, inln_b_ref,
    wqkv_ref, bqkv_ref, wo_ref, bo_ref, ln1_g_ref, ln1_b_ref,
    w1_ref, b1_ref, w2_ref, b2_ref, ln2_g_ref, ln2_b_ref,
    o_ref,
    *, num_heads, apply_input_ln, eps,
):
    B = mask_ref.shape[0]
    S = mask_ref.shape[2]
    M, H = x_ref.shape                      # M == B * S
    head_dim = H // num_heads
    scale = 1.0 / math.sqrt(head_dim)

    x = x_ref[...]                          # [M, H] fp32
    if apply_input_ln:                      # fused embedding LayerNorm (layer 0)
        x = _ln(x, inln_g_ref[...], inln_b_ref[...], eps)

    # ---- fused QKV projection: one bf16 MXU pass, fp32 accumulation ----
    x_bf = x.astype(jnp.bfloat16)
    qkv = jnp.dot(x_bf, wqkv_ref[...],
                  preferred_element_type=jnp.float32) + bqkv_ref[...]   # [M, 3H]
    q = qkv[:, 0 * H:1 * H].astype(jnp.bfloat16)
    k = qkv[:, 1 * H:2 * H].astype(jnp.bfloat16)
    v = qkv[:, 2 * H:3 * H].astype(jnp.bfloat16)

    add_mask = mask_ref[...]                # [B, 1, S] broadcasts over query rows
    wo = wo_ref[...]                        # [H, H] bf16

    # ---- attention: static head loop, batched over B, all in vregs ----
    # Head contexts are folded directly into the output projection
    # (ctx @ Wo == sum_h ctx_h @ Wo[h]); no VMEM scratch, no masked column stores.
    attn_acc = jnp.zeros((M, H), jnp.float32)
    for h in range(num_heads):
        sl = slice(h * head_dim, (h + 1) * head_dim)
        qh = q[:, sl].reshape(B, S, head_dim)
        kh = k[:, sl].reshape(B, S, head_dim)
        vh = v[:, sl].reshape(B, S, head_dim)
        s = jnp.einsum('bqd,bkd->bqk', qh, kh,
                       preferred_element_type=jnp.float32) * scale + add_mask
        s = s - jnp.max(s, axis=-1, keepdims=True)
        p = jnp.exp(s)
        p = p / jnp.sum(p, axis=-1, keepdims=True)          # exact softmax divide
        ctx_h = jnp.einsum('bqk,bkd->bqd', p.astype(jnp.bfloat16), vh,
                           preferred_element_type=jnp.float32)           # [B,S,hd]
        ctx_h = ctx_h.reshape(M, head_dim).astype(jnp.bfloat16)
        attn_acc = attn_acc + jnp.dot(ctx_h, wo[sl, :],
                                      preferred_element_type=jnp.float32)

    # ---- output projection bias + residual + LayerNorm ----
    attn_out = attn_acc + bo_ref[...]
    x1 = _ln(attn_out + x, ln1_g_ref[...], ln1_b_ref[...], eps)

    # ---- FFN: gelu(x1 @ W1 + b1) @ W2 + b2 + residual + LayerNorm ----
    h1 = jnp.dot(x1.astype(jnp.bfloat16), w1_ref[...],
                 preferred_element_type=jnp.float32) + b1_ref[...]
    h1 = _gelu_exact(h1)
    ff = jnp.dot(h1.astype(jnp.bfloat16), w2_ref[...],
                 preferred_element_type=jnp.float32) + b2_ref[...]
    o_ref[...] = _ln(ff + x1, ln2_g_ref[...], ln2_b_ref[...], eps)


def _encoder_layer(x_2d, add_mask_b1s, lp, num_heads, input_ln=None):
    """x_2d: [B*S, H] fp32; add_mask_b1s: [B, 1, S] fp32 additive bias."""
    M, H = x_2d.shape
    apply_input_ln = input_ln is not None
    if apply_input_ln:
        in_g = input_ln[0].reshape(1, H)
        in_b = input_ln[1].reshape(1, H)
    else:
        in_g = jnp.ones((1, H), jnp.float32)
        in_b = jnp.zeros((1, H), jnp.float32)

    kernel = partial(_encoder_layer_kernel, num_heads=num_heads,
                     apply_input_ln=apply_input_ln, eps=LN_EPS)

    # Single-step invocation: whole arrays land in VMEM (no grid, no pipelining).
    # TODO(synk): at real BERT scale (H=768, S~512) tile the sequence / FFN-K dims
    # and raise vmem_limit_bytes via pltpu.CompilerParams; not needed at toy sizes.
    return pl.pallas_call(
        kernel,
        out_shape=jax.ShapeDtypeStruct((M, H), jnp.float32),
    )(
        x_2d, add_mask_b1s, in_g, in_b,
        lp["wqkv"], lp["bqkv"].reshape(1, -1),
        lp["o_w"], lp["o_b"].reshape(1, -1),
        lp["attn_ln_g"].reshape(1, -1), lp["attn_ln_b"].reshape(1, -1),
        lp["ffn_in_w"], lp["ffn_in_b"].reshape(1, -1),
        lp["ffn_out_w"], lp["ffn_out_b"].reshape(1, -1),
        lp["ffn_ln_g"].reshape(1, -1), lp["ffn_ln_b"].reshape(1, -1),
    )


# ----------------------------------------------------------------------------
# Small BERT config + deterministic parameter construction
# ----------------------------------------------------------------------------
CONFIG = dict(
    vocab_size=100,
    hidden_size=32,
    num_layers=2,
    num_heads=4,
    intermediate_size=64,
    max_position=16,
    type_vocab_size=2,
    num_labels=3,
)


def init_params(key, cfg):
    H = cfg["hidden_size"]
    I = cfg["intermediate_size"]
    std = 0.02

    def nrm(k, shape, dtype=jnp.float32):
        return (std * jax.random.normal(k, shape, dtype=jnp.float32)).astype(dtype)

    keys = iter(jax.random.split(key, 8 + 8 * cfg["num_layers"]))
    p = {
        "word_emb": nrm(next(keys), (cfg["vocab_size"], H)),
        "pos_emb": nrm(next(keys), (cfg["max_position"], H)),
        "tok_emb": nrm(next(keys), (cfg["type_vocab_size"], H)),
        "emb_ln_g": jnp.ones((H,), jnp.float32),
        "emb_ln_b": jnp.zeros((H,), jnp.float32),
        "pooler_w": nrm(next(keys), (H, H)),
        "pooler_b": jnp.zeros((H,), jnp.float32),
        "cls_w": nrm(next(keys), (H, cfg["num_labels"])),
        "cls_b": jnp.zeros((cfg["num_labels"],), jnp.float32),
        "layers": [],
    }
    for _ in range(cfg["num_layers"]):
        lp = {
            # fused Q|K|V projection weights, stored bf16 for the MXU
            "wqkv": nrm(next(keys), (H, 3 * H), jnp.bfloat16),
            "bqkv": jnp.zeros((3 * H,), jnp.float32),
            "o_w": nrm(next(keys), (H, H), jnp.bfloat16),
            "o_b": jnp.zeros((H,), jnp.float32),
            "attn_ln_g": jnp.ones((H,), jnp.float32),
            "attn_ln_b": jnp.zeros((H,), jnp.float32),
            "ffn_in_w": nrm(next(keys), (H, I), jnp.bfloat16),
            "ffn_in_b": jnp.zeros((I,), jnp.float32),
            "ffn_out_w": nrm(next(keys), (I, H), jnp.bfloat16),
            "ffn_out_b": jnp.zeros((H,), jnp.float32),
            "ffn_ln_g": jnp.ones((H,), jnp.float32),
            "ffn_ln_b": jnp.zeros((H,), jnp.float32),
        }
        p["layers"].append(lp)
    return p


# ----------------------------------------------------------------------------
# Forward pass (BERT encoder + pooler + classifier); dropout == identity (eval)
# ----------------------------------------------------------------------------
def bert_classifier_forward(params, input_ids, attention_mask, token_type_ids,
                            cfg=CONFIG, last=False):
    B, S = input_ids.shape
    H = cfg["hidden_size"]
    nh = cfg["num_heads"]

    # --- embeddings (gathers are XLA glue) ---
    positions = jnp.arange(S, dtype=jnp.int32)
    emb = (params["word_emb"][input_ids]
           + params["pos_emb"][positions][None, :, :]
           + params["tok_emb"][token_type_ids])
    x = emb.reshape(B * S, H)
    # TODO(synk): hidden_dropout / classifier_dropout are identity (eval-mode semantics).

    # --- compact additive attention mask [B, 1, S]; broadcast happens in-kernel ---
    add_mask = ((1.0 - attention_mask.astype(jnp.float32)) * MASK_VALUE).reshape(B, 1, S)

    # --- encoder layers: one fused single-step Pallas kernel per layer;
    #     the embedding LayerNorm is fused into layer 0 ---
    if not params["layers"]:
        x = _ln(x, params["emb_ln_g"].reshape(1, H), params["emb_ln_b"].reshape(1, H))
    for li, lp in enumerate(params["layers"]):
        input_ln = (params["emb_ln_g"], params["emb_ln_b"]) if li == 0 else None
        x = _encoder_layer(x, add_mask, lp, nh, input_ln=input_ln)

    x = x.reshape(B, S, H)

    # --- pooler + classifier: tiny lane widths (32 / 3) -> left to XLA ---
    cls_tok = x[:, 0, :]                                        # [B, H]
    pooled = jnp.tanh(cls_tok @ params["pooler_w"] + params["pooler_b"])
    # dropout(pooled) -> identity (eval)
    logits = pooled @ params["cls_w"] + params["cls_b"]         # [B, num_labels]

    if last:
        return logits, pooled
    return logits


# ----------------------------------------------------------------------------
if __name__ == "__main__":
    key = jax.random.PRNGKey(0)
    pkey, ikey = jax.random.split(key)

    params = init_params(pkey, CONFIG)

    B, S = 2, 8
    input_ids = jax.random.randint(ikey, (B, S), 0, CONFIG["vocab_size"], dtype=jnp.int32)
    attention_mask = jnp.ones((B, S), dtype=jnp.int32)
    token_type_ids = jnp.zeros((B, S), dtype=jnp.int32)

    logits = bert_classifier_forward(params, input_ids, attention_mask, token_type_ids)
    logits = jax.block_until_ready(logits)
    assert logits.shape == (B, CONFIG["num_labels"])
    assert bool(jnp.all(jnp.isfinite(logits)))
    print("KERNEL_OK")
</pallas_src>

<mosaic_0001>
module attributes {stable_mosaic.version = 11 : i64} {
  func.func @_encoder_layer_kernel(%arg0: memref<16x32xf32, #tpu.memory_space<vmem>>, %arg1: memref<2x1x8xf32, #tpu.memory_space<vmem>>, %arg2: memref<1x32xf32, #tpu.memory_space<vmem>>, %arg3: memref<1x32xf32, #tpu.memory_space<vmem>>, %arg4: memref<32x96xbf16, #tpu.memory_space<vmem>>, %arg5: memref<1x96xf32, #tpu.memory_space<vmem>>, %arg6: memref<32x32xbf16, #tpu.memory_space<vmem>>, %arg7: memref<1x32xf32, #tpu.memory_space<vmem>>, %arg8: memref<1x32xf32, #tpu.memory_space<vmem>>, %arg9: memref<1x32xf32, #tpu.memory_space<vmem>>, %arg10: memref<32x64xbf16, #tpu.memory_space<vmem>>, %arg11: memref<1x64xf32, #tpu.memory_space<vmem>>, %arg12: memref<64x32xbf16, #tpu.memory_space<vmem>>, %arg13: memref<1x32xf32, #tpu.memory_space<vmem>>, %arg14: memref<1x32xf32, #tpu.memory_space<vmem>>, %arg15: memref<1x32xf32, #tpu.memory_space<vmem>>, %arg16: memref<16x32xf32, #tpu.memory_space<vmem>>) attributes {dimension_semantics = [], scalar_prefetch = 0 : i64, scratch_operands = 0 : i64, tpu.core_type = #tpu.core_type<tc>} {
    %c0 = arith.constant 0 : index
    %c0_0 = arith.constant 0 : index
    %0 = vector.load %arg0[%c0, %c0_0] : memref<16x32xf32, #tpu.memory_space<vmem>>, vector<16x32xf32>
    %c0_1 = arith.constant 0 : index
    %c0_2 = arith.constant 0 : index
    %1 = vector.load %arg2[%c0_1, %c0_2] : memref<1x32xf32, #tpu.memory_space<vmem>>, vector<1x32xf32>
    %c0_3 = arith.constant 0 : index
    %c0_4 = arith.constant 0 : index
    %2 = vector.load %arg3[%c0_3, %c0_4] : memref<1x32xf32, #tpu.memory_space<vmem>>, vector<1x32xf32>
    %cst = arith.constant dense<0.000000e+00> : vector<16xf32>
    %3 = vector.multi_reduction <add>, %0, %cst [1] : vector<16x32xf32> to vector<16xf32>
    %4 = vector.shape_cast %3 : vector<16xf32> to vector<16x1xf32>
    %cst_5 = arith.constant 3.200000e+01 : f32
    %5 = vector.broadcast %cst_5 : f32 to vector<16x1xf32>
    %6 = arith.divf %4, %5 : vector<16x1xf32>
    %7 = vector.broadcast %6 : vector<16x1xf32> to vector<16x32xf32>
    %8 = arith.subf %0, %7 : vector<16x32xf32>
    %9 = arith.mulf %8, %8 : vector<16x32xf32>
    %cst_6 = arith.constant dense<0.000000e+00> : vector<16xf32>
    %10 = vector.multi_reduction <add>, %9, %cst_6 [1] : vector<16x32xf32> to vector<16xf32>
    %11 = vector.shape_cast %10 : vector<16xf32> to vector<16x1xf32>
    %cst_7 = arith.constant 3.200000e+01 : f32
    %12 = vector.broadcast %cst_7 : f32 to vector<16x1xf32>
    %13 = arith.divf %11, %12 : vector<16x1xf32>
    %14 = vector.broadcast %6 : vector<16x1xf32> to vector<16x32xf32>
    %15 = arith.subf %0, %14 : vector<16x32xf32>
    %cst_8 = arith.constant 9.99999996E-13 : f32
    %16 = vector.broadcast %cst_8 : f32 to vector<16x1xf32>
    %17 = arith.addf %13, %16 : vector<16x1xf32>
    %18 = math.rsqrt %17 : vector<16x1xf32>
    %19 = vector.broadcast %18 : vector<16x1xf32> to vector<16x32xf32>
    %20 = arith.mulf %15, %19 : vector<16x32xf32>
    %21 = vector.broadcast %1 : vector<1x32xf32> to vector<16x32xf32>
    %22 = arith.mulf %20, %21 : vector<16x32xf32>
    %23 = vector.broadcast %2 : vector<1x32xf32> to vector<16x32xf32>
    %24 = arith.addf %22, %23 : vector<16x32xf32>
    %25 = arith.truncf %24 : vector<16x32xf32> to vector<16x32xbf16>
    %c0_9 = arith.constant 0 : index
    %c0_10 = arith.constant 0 : index
    %26 = vector.load %arg4[%c0_9, %c0_10] : memref<32x96xbf16, #tpu.memory_space<vmem>>, vector<32x96xbf16>
    %cst_11 = arith.constant dense<0.000000e+00> : vector<16x96xf32>
    %27 = tpu.matmul %25, %26, %cst_11 {dimension_numbers = #tpu.dot_dimension_numbers<[1], [0], [0], [1], [0, 0, 1, 1], [], []>} : vector<16x32xbf16>, vector<32x96xbf16>, vector<16x96xf32> -> vector<16x96xf32>
    %c0_12 = arith.constant 0 : index
    %c0_13 = arith.constant 0 : index
    %28 = vector.load %arg5[%c0_12, %c0_13] : memref<1x96xf32, #tpu.memory_space<vmem>>, vector<1x96xf32>
    %29 = vector.broadcast %28 : vector<1x96xf32> to vector<16x96xf32>
    %30 = arith.addf %27, %29 : vector<16x96xf32>
    %31 = vector.extract_strided_slice %30 {offsets = [0, 0], sizes = [16, 32], strides = [1, 1]} : vector<16x96xf32> to vector<16x32xf32>
    %32 = arith.truncf %31 : vector<16x32xf32> to vector<16x32xbf16>
    %33 = vector.extract_strided_slice %30 {offsets = [0, 32], sizes = [16, 32], strides = [1, 1]} : vector<16x96xf32> to vector<16x32xf32>
    %34 = arith.truncf %33 : vector<16x32xf32> to vector<16x32xbf16>
    %35 = vector.extract_strided_slice %30 {offsets = [0, 64], sizes = [16, 32], strides = [1, 1]} : vector<16x96xf32> to vector<16x32xf32>
    %36 = arith.truncf %35 : vector<16x32xf32> to vector<16x32xbf16>
    %c0_14 = arith.constant 0 : index
    %c0_15 = arith.constant 0 : index
    %c0_16 = arith.constant 0 : index
    %37 = vector.load %arg1[%c0_14, %c0_15, %c0_16] : memref<2x1x8xf32, #tpu.memory_space<vmem>>, vector<2x1x8xf32>
    %c0_17 = arith.constant 0 : index
    %c0_18 = arith.constant 0 : index
    %38 = vector.load %arg6[%c0_17, %c0_18] : memref<32x32xbf16, #tpu.memory_space<vmem>>, vector<32x32xbf16>
    %cst_19 = arith.constant 0.000000e+00 : f32
    %39 = vector.broadcast %cst_19 : f32 to vector<16x32xf32>
    %40 = vector.extract_strided_slice %32 {offsets = [0, 0], sizes = [16, 8], strides = [1, 1]} : vector<16x32xbf16> to vector<16x8xbf16>
    %41 = vector.shape_cast %40 : vector<16x8xbf16> to vector<2x8x8xbf16>
    %42 = vector.extract_strided_slice %34 {offsets = [0, 0], sizes = [16, 8], strides = [1, 1]} : vector<16x32xbf16> to vector<16x8xbf16>
    %43 = vector.shape_cast %42 : vector<16x8xbf16> to vector<2x8x8xbf16>
    %44 = vector.extract_strided_slice %36 {offsets = [0, 0], sizes = [16, 8], strides = [1, 1]} : vector<16x32xbf16> to vector<16x8xbf16>
    %45 = vector.shape_cast %44 : vector<16x8xbf16> to vector<2x8x8xbf16>
    "tpu.trace_start"() <{level = 10 : i32, message = "bqd,bkd->bqk"}> : () -> ()
    %cst_20 = arith.constant dense<0.000000e+00> : vector<2x8x8xf32>
    %46 = tpu.matmul %41, %43, %cst_20 {dimension_numbers = #tpu.dot_dimension_numbers<[2], [2], [1], [1], [0, 0, 0, 1, 1, 1], [0], [0]>} : vector<2x8x8xbf16>, vector<2x8x8xbf16>, vector<2x8x8xf32> -> vector<2x8x8xf32>
    "tpu.trace_stop"() : () -> ()
    %cst_21 = arith.constant 0.353553385 : f32
    %47 = vector.broadcast %cst_21 : f32 to vector<2x8x8xf32>
    %48 = arith.mulf %46, %47 : vector<2x8x8xf32>
    %49 = vector.broadcast %37 : vector<2x1x8xf32> to vector<2x8x8xf32>
    %50 = arith.addf %48, %49 : vector<2x8x8xf32>
    %cst_22 = arith.constant dense<0xFF800000> : vector<2x8xf32>
    %51 = vector.multi_reduction <maximumf>, %50, %cst_22 [2] : vector<2x8x8xf32> to vector<2x8xf32>
    %52 = vector.shape_cast %51 : vector<2x8xf32> to vector<2x8x1xf32>
    %53 = vector.broadcast %52 : vector<2x8x1xf32> to vector<2x8x8xf32>
    %54 = arith.subf %50, %53 : vector<2x8x8xf32>
    %55 = math.exp %54 : vector<2x8x8xf32>
    %cst_23 = arith.constant dense<0.000000e+00> : vector<2x8xf32>
    %56 = vector.multi_reduction <add>, %55, %cst_23 [2] : vector<2x8x8xf32> to vector<2x8xf32>
    %57 = vector.shape_cast %56 : vector<2x8xf32> to vector<2x8x1xf32>
    %58 = vector.broadcast %57 : vector<2x8x1xf32> to vector<2x8x8xf32>
    %59 = arith.divf %55, %58 : vector<2x8x8xf32>
    %60 = arith.truncf %59 : vector<2x8x8xf32> to vector<2x8x8xbf16>
    "tpu.trace_start"() <{level = 10 : i32, message = "bqk,bkd->bqd"}> : () -> ()
    %cst_24 = arith.constant dense<0.000000e+00> : vector<2x8x8xf32>
    %61 = tpu.matmul %60, %45, %cst_24 {dimension_numbers = #tpu.dot_dimension_numbers<[2], [1], [1], [2], [0, 0, 0, 1, 1, 2], [0], [0]>} : vector<2x8x8xbf16>, vector<2x8x8xbf16>, vector<2x8x8xf32> -> vector<2x8x8xf32>
    "tpu.trace_stop"() : () -> ()
    %62 = vector.shape_cast %61 : vector<2x8x8xf32> to vector<16x8xf32>
    %63 = arith.truncf %62 : vector<16x8xf32> to vector<16x8xbf16>
    %64 = vector.extract_strided_slice %38 {offsets = [0, 0], sizes = [8, 32], strides = [1, 1]} : vector<32x32xbf16> to vector<8x32xbf16>
    %cst_25 = arith.constant dense<0.000000e+00> : vector<16x32xf32>
    %65 = tpu.matmul %63, %64, %cst_25 {dimension_numbers = #tpu.dot_dimension_numbers<[1], [0], [0], [1], [0, 0, 1, 1], [], []>} : vector<16x8xbf16>, vector<8x32xbf16>, vector<16x32xf32> -> vector<16x32xf32>
    %66 = arith.addf %39, %65 : vector<16x32xf32>
    %67 = vector.extract_strided_slice %32 {offsets = [0, 8], sizes = [16, 8], strides = [1, 1]} : vector<16x32xbf16> to vector<16x8xbf16>
    %68 = vector.shape_cast %67 : vector<16x8xbf16> to vector<2x8x8xbf16>
    %69 = vector.extract_strided_slice %34 {offsets = [0, 8], sizes = [16, 8], strides = [1, 1]} : vector<16x32xbf16> to vector<16x8xbf16>
    %70 = vector.shape_cast %69 : vector<16x8xbf16> to vector<2x8x8xbf16>
    %71 = vector.extract_strided_slice %36 {offsets = [0, 8], sizes = [16, 8], strides = [1, 1]} : vector<16x32xbf16> to vector<16x8xbf16>
    %72 = vector.shape_cast %71 : vector<16x8xbf16> to vector<2x8x8xbf16>
    "tpu.trace_start"() <{level = 10 : i32, message = "bqd,bkd->bqk"}> : () -> ()
    %cst_26 = arith.constant dense<0.000000e+00> : vector<2x8x8xf32>
    %73 = tpu.matmul %68, %70, %cst_26 {dimension_numbers = #tpu.dot_dimension_numbers<[2], [2], [1], [1], [0, 0, 0, 1, 1, 1], [0], [0]>} : vector<2x8x8xbf16>, vector<2x8x8xbf16>, vector<2x8x8xf32> -> vector<2x8x8xf32>
    "tpu.trace_stop"() : () -> ()
    %cst_27 = arith.constant 0.353553385 : f32
    %74 = vector.broadcast %cst_27 : f32 to vector<2x8x8xf32>
    %75 = arith.mulf %73, %74 : vector<2x8x8xf32>
    %76 = vector.broadcast %37 : vector<2x1x8xf32> to vector<2x8x8xf32>
    %77 = arith.addf %75, %76 : vector<2x8x8xf32>
    %cst_28 = arith.constant dense<0xFF800000> : vector<2x8xf32>
    %78 = vector.multi_reduction <maximumf>, %77, %cst_28 [2] : vector<2x8x8xf32> to vector<2x8xf32>
    %79 = vector.shape_cast %78 : vector<2x8xf32> to vector<2x8x1xf32>
    %80 = vector.broadcast %79 : vector<2x8x1xf32> to vector<2x8x8xf32>
    %81 = arith.subf %77, %80 : vector<2x8x8xf32>
    %82 = math.exp %81 : vector<2x8x8xf32>
    %cst_29 = arith.constant dense<0.000000e+00> : vector<2x8xf32>
    %83 = vector.multi_reduction <add>, %82, %cst_29 [2] : vector<2x8x8xf32> to vector<2x8xf32>
    %84 = vector.shape_cast %83 : vector<2x8xf32> to vector<2x8x1xf32>
    %85 = vector.broadcast %84 : vector<2x8x1xf32> to vector<2x8x8xf32>
    %86 = arith.divf %82, %85 : vector<2x8x8xf32>
    %87 = arith.truncf %86 : vector<2x8x8xf32> to vector<2x8x8xbf16>
    "tpu.trace_start"() <{level = 10 : i32, message = "bqk,bkd->bqd"}> : () -> ()
    %cst_30 = arith.constant dense<0.000000e+00> : vector<2x8x8xf32>
    %88 = tpu.matmul %87, %72, %cst_30 {dimension_numbers = #tpu.dot_dimension_numbers<[2], [1], [1], [2], [0, 0, 0, 1, 1, 2], [0], [0]>} : vector<2x8x8xbf16>, vector<2x8x8xbf16>, vector<2x8x8xf32> -> vector<2x8x8xf32>
    "tpu.trace_stop"() : () -> ()
    %89 = vector.shape_cast %88 : vector<2x8x8xf32> to vector<16x8xf32>
    %90 = arith.truncf %89 : vector<16x8xf32> to vector<16x8xbf16>
    %91 = vector.extract_strided_slice %38 {offsets = [8, 0], sizes = [8, 32], strides = [1, 1]} : vector<32x32xbf16> to vector<8x32xbf16>
    %cst_31 = arith.constant dense<0.000000e+00> : vector<16x32xf32>
    %92 = tpu.matmul %90, %91, %cst_31 {dimension_numbers = #tpu.dot_dimension_numbers<[1], [0], [0], [1], [0, 0, 1, 1], [], []>} : vector<16x8xbf16>, vector<8x32xbf16>, vector<16x32xf32> -> vector<16x32xf32>
    %93 = arith.addf %66, %92 : vector<16x32xf32>
    %94 = vector.extract_strided_slice %32 {offsets = [0, 16], sizes = [16, 8], strides = [1, 1]} : vector<16x32xbf16> to vector<16x8xbf16>
    %95 = vector.shape_cast %94 : vector<16x8xbf16> to vector<2x8x8xbf16>
    %96 = vector.extract_strided_slice %34 {offsets = [0, 16], sizes = [16, 8], strides = [1, 1]} : vector<16x32xbf16> to vector<16x8xbf16>
    %97 = vector.shape_cast %96 : vector<16x8xbf16> to vector<2x8x8xbf16>
    %98 = vector.extract_strided_slice %36 {offsets = [0, 16], sizes = [16, 8], strides = [1, 1]} : vector<16x32xbf16> to vector<16x8xbf16>
    %99 = vector.shape_cast %98 : vector<16x8xbf16> to vector<2x8x8xbf16>
    "tpu.trace_start"() <{level = 10 : i32, message = "bqd,bkd->bqk"}> : () -> ()
    %cst_32 = arith.constant dense<0.000000e+00> : vector<2x8x8xf32>
    %100 = tpu.matmul %95, %97, %cst_32 {dimension_numbers = #tpu.dot_dimension_numbers<[2], [2], [1], [1], [0, 0, 0, 1, 1, 1], [0], [0]>} : vector<2x8x8xbf16>, vector<2x8x8xbf16>, vector<2x8x8xf32> -> vector<2x8x8xf32>
    "tpu.trace_stop"() : () -> ()
    %cst_33 = arith.constant 0.353553385 : f32
    %101 = vector.broadcast %cst_33 : f32 to vector<2x8x8xf32>
    %102 = arith.mulf %100, %101 : vector<2x8x8xf32>
    %103 = vector.broadcast %37 : vector<2x1x8xf32> to vector<2x8x8xf32>
    %104 = arith.addf %102, %103 : vector<2x8x8xf32>
    %cst_34 = arith.constant dense<0xFF800000> : vector<2x8xf32>
    %105 = vector.multi_reduction <maximumf>, %104, %cst_34 [2] : vector<2x8x8xf32> to vector<2x8xf32>
    %106 = vector.shape_cast %105 : vector<2x8xf32> to vector<2x8x1xf32>
    %107 = vector.broadcast %106 : vector<2x8x1xf32> to vector<2x8x8xf32>
    %108 = arith.subf %104, %107 : vector<2x8x8xf32>
    %109 = math.exp %108 : vector<2x8x8xf32>
    %cst_35 = arith.constant dense<0.000000e+00> : vector<2x8xf32>
    %110 = vector.multi_reduction <add>, %109, %cst_35 [2] : vector<2x8x8xf32> to vector<2x8xf32>
    %111 = vector.shape_cast %110 : vector<2x8xf32> to vector<2x8x1xf32>
    %112 = vector.broadcast %111 : vector<2x8x1xf32> to vector<2x8x8xf32>
    %113 = arith.divf %109, %112 : vector<2x8x8xf32>
    %114 = arith.truncf %113 : vector<2x8x8xf32> to vector<2x8x8xbf16>
    "tpu.trace_start"() <{level = 10 : i32, message = "bqk,bkd->bqd"}> : () -> ()
    %cst_36 = arith.constant dense<0.000000e+00> : vector<2x8x8xf32>
    %115 = tpu.matmul %114, %99, %cst_36 {dimension_numbers = #tpu.dot_dimension_numbers<[2], [1], [1], [2], [0, 0, 0, 1, 1, 2], [0], [0]>} : vector<2x8x8xbf16>, vector<2x8x8xbf16>, vector<2x8x8xf32> -> vector<2x8x8xf32>
    "tpu.trace_stop"() : () -> ()
    %116 = vector.shape_cast %115 : vector<2x8x8xf32> to vector<16x8xf32>
    %117 = arith.truncf %116 : vector<16x8xf32> to vector<16x8xbf16>
    %118 = vector.extract_strided_slice %38 {offsets = [16, 0], sizes = [8, 32], strides = [1, 1]} : vector<32x32xbf16> to vector<8x32xbf16>
    %cst_37 = arith.constant dense<0.000000e+00> : vector<16x32xf32>
    %119 = tpu.matmul %117, %118, %cst_37 {dimension_numbers = #tpu.dot_dimension_numbers<[1], [0], [0], [1], [0, 0, 1, 1], [], []>} : vector<16x8xbf16>, vector<8x32xbf16>, vector<16x32xf32> -> vector<16x32xf32>
    %120 = arith.addf %93, %119 : vector<16x32xf32>
    %121 = vector.extract_strided_slice %32 {offsets = [0, 24], sizes = [16, 8], strides = [1, 1]} : vector<16x32xbf16> to vector<16x8xbf16>
    %122 = vector.shape_cast %121 : vector<16x8xbf16> to vector<2x8x8xbf16>
    %123 = vector.extract_strided_slice %34 {offsets = [0, 24], sizes = [16, 8], strides = [1, 1]} : vector<16x32xbf16> to vector<16x8xbf16>
    %124 = vector.shape_cast %123 : vector<16x8xbf16> to vector<2x8x8xbf16>
    %125 = vector.extract_strided_slice %36 {offsets = [0, 24], sizes = [16, 8], strides = [1, 1]} : vector<16x32xbf16> to vector<16x8xbf16>
    %126 = vector.shape_cast %125 : vector<16x8xbf16> to vector<2x8x8xbf16>
    "tpu.trace_start"() <{level = 10 : i32, message = "bqd,bkd->bqk"}> : () -> ()
    %cst_38 = arith.constant dense<0.000000e+00> : vector<2x8x8xf32>
    %127 = tpu.matmul %122, %124, %cst_38 {dimension_numbers = #tpu.dot_dimension_numbers<[2], [2], [1], [1], [0, 0, 0, 1, 1, 1], [0], [0]>} : vector<2x8x8xbf16>, vector<2x8x8xbf16>, vector<2x8x8xf32> -> vector<2x8x8xf32>
    "tpu.trace_stop"() : () -> ()
    %cst_39 = arith.constant 0.353553385 : f32
    %128 = vector.broadcast %cst_39 : f32 to vector<2x8x8xf32>
    %129 = arith.mulf %127, %128 : vector<2x8x8xf32>
    %130 = vector.broadcast %37 : vector<2x1x8xf32> to vector<2x8x8xf32>
    %131 = arith.addf %129, %130 : vector<2x8x8xf32>
    %cst_40 = arith.constant dense<0xFF800000> : vector<2x8xf32>
    %132 = vector.multi_reduction <maximumf>, %131, %cst_40 [2] : vector<2x8x8xf32> to vector<2x8xf32>
    %133 = vector.shape_cast %132 : vector<2x8xf32> to vector<2x8x1xf32>
    %134 = vector.broadcast %133 : vector<2x8x1xf32> to vector<2x8x8xf32>
    %135 = arith.subf %131, %134 : vector<2x8x8xf32>
    %136 = math.exp %135 : vector<2x8x8xf32>
    %cst_41 = arith.constant dense<0.000000e+00> : vector<2x8xf32>
    %137 = vector.multi_reduction <add>, %136, %cst_41 [2] : vector<2x8x8xf32> to vector<2x8xf32>
    %138 = vector.shape_cast %137 : vector<2x8xf32> to vector<2x8x1xf32>
    %139 = vector.broadcast %138 : vector<2x8x1xf32> to vector<2x8x8xf32>
    %140 = arith.divf %136, %139 : vector<2x8x8xf32>
    %141 = arith.truncf %140 : vector<2x8x8xf32> to vector<2x8x8xbf16>
    "tpu.trace_start"() <{level = 10 : i32, message = "bqk,bkd->bqd"}> : () -> ()
    %cst_42 = arith.constant dense<0.000000e+00> : vector<2x8x8xf32>
    %142 = tpu.matmul %141, %126, %cst_42 {dimension_numbers = #tpu.dot_dimension_numbers<[2], [1], [1], [2], [0, 0, 0, 1, 1, 2], [0], [0]>} : vector<2x8x8xbf16>, vector<2x8x8xbf16>, vector<2x8x8xf32> -> vector<2x8x8xf32>
    "tpu.trace_stop"() : () -> ()
    %143 = vector.shape_cast %142 : vector<2x8x8xf32> to vector<16x8xf32>
    %144 = arith.truncf %143 : vector<16x8xf32> to vector<16x8xbf16>
    %145 = vector.extract_strided_slice %38 {offsets = [24, 0], sizes = [8, 32], strides = [1, 1]} : vector<32x32xbf16> to vector<8x32xbf16>
    %cst_43 = arith.constant dense<0.000000e+00> : vector<16x32xf32>
    %146 = tpu.matmul %144, %145, %cst_43 {dimension_numbers = #tpu.dot_dimension_numbers<[1], [0], [0], [1], [0, 0, 1, 1], [], []>} : vector<16x8xbf16>, vector<8x32xbf16>, vector<16x32xf32> -> vector<16x32xf32>
    %147 = arith.addf %120, %146 : vector<16x32xf32>
    %c0_44 = arith.constant 0 : index
    %c0_45 = arith.constant 0 : index
    %148 = vector.load %arg7[%c0_44, %c0_45] : memref<1x32xf32, #tpu.memory_space<vmem>>, vector<1x32xf32>
    %149 = vector.broadcast %148 : vector<1x32xf32> to vector<16x32xf32>
    %150 = arith.addf %147, %149 : vector<16x32xf32>
    %151 = arith.addf %150, %24 : vector<16x32xf32>
    %c0_46 = arith.constant 0 : index
    %c0_47 = arith.constant 0 : index
    %152 = vector.load %arg8[%c0_46, %c0_47] : memref<1x32xf32, #tpu.memory_space<vmem>>, vector<1x32xf32>
    %c0_48 = arith.constant 0 : index
    %c0_49 = arith.constant 0 : index
    %153 = vector.load %arg9[%c0_48, %c0_49] : memref<1x32xf32, #tpu.memory_space<vmem>>, vector<1x32xf32>
    %cst_50 = arith.constant dense<0.000000e+00> : vector<16xf32>
    %154 = vector.multi_reduction <add>, %151, %cst_50 [1] : vector<16x32xf32> to vector<16xf32>
    %155 = vector.shape_cast %154 : vector<16xf32> to vector<16x1xf32>
    %cst_51 = arith.constant 3.200000e+01 : f32
    %156 = vector.broadcast %cst_51 : f32 to vector<16x1xf32>
    %157 = arith.divf %155, %156 : vector<16x1xf32>
    %158 = vector.broadcast %157 : vector<16x1xf32> to vector<16x32xf32>
    %159 = arith.subf %151, %158 : vector<16x32xf32>
    %160 = arith.mulf %159, %159 : vector<16x32xf32>
    %cst_52 = arith.constant dense<0.000000e+00> : vector<16xf32>
    %161 = vector.multi_reduction <add>, %160, %cst_52 [1] : vector<16x32xf32> to vector<16xf32>
    %162 = vector.shape_cast %161 : vector<16xf32> to vector<16x1xf32>
    %cst_53 = arith.constant 3.200000e+01 : f32
    %163 = vector.broadcast %cst_53 : f32 to vector<16x1xf32>
    %164 = arith.divf %162, %163 : vector<16x1xf32>
    %165 = vector.broadcast %157 : vector<16x1xf32> to vector<16x32xf32>
    %166 = arith.subf %151, %165 : vector<16x32xf32>
    %cst_54 = arith.constant 9.99999996E-13 : f32
    %167 = vector.broadcast %cst_54 : f32 to vector<16x1xf32>
    %168 = arith.addf %164, %167 : vector<16x1xf32>
    %169 = math.rsqrt %168 : vector<16x1xf32>
    %170 = vector.broadcast %169 : vector<16x1xf32> to vector<16x32xf32>
    %171 = arith.mulf %166, %170 : vector<16x32xf32>
    %172 = vector.broadcast %152 : vector<1x32xf32> to vector<16x32xf32>
    %173 = arith.mulf %171, %172 : vector<16x32xf32>
    %174 = vector.broadcast %153 : vector<1x32xf32> to vector<16x32xf32>
    %175 = arith.addf %173, %174 : vector<16x32xf32>
    %176 = arith.truncf %175 : vector<16x32xf32> to vector<16x32xbf16>
    %c0_55 = arith.constant 0 : index
    %c0_56 = arith.constant 0 : index
    %177 = vector.load %arg10[%c0_55, %c0_56] : memref<32x64xbf16, #tpu.memory_space<vmem>>, vector<32x64xbf16>
    %cst_57 = arith.constant dense<0.000000e+00> : vector<16x64xf32>
    %178 = tpu.matmul %176, %177, %cst_57 {dimension_numbers = #tpu.dot_dimension_numbers<[1], [0], [0], [1], [0, 0, 1, 1], [], []>} : vector<16x32xbf16>, vector<32x64xbf16>, vector<16x64xf32> -> vector<16x64xf32>
    %c0_58 = arith.constant 0 : index
    %c0_59 = arith.constant 0 : index
    %179 = vector.load %arg11[%c0_58, %c0_59] : memref<1x64xf32, #tpu.memory_space<vmem>>, vector<1x64xf32>
    %180 = vector.broadcast %179 : vector<1x64xf32> to vector<16x64xf32>
    %181 = arith.addf %178, %180 : vector<16x64xf32>
    %cst_60 = arith.constant 5.000000e-01 : f32
    %182 = vector.broadcast %cst_60 : f32 to vector<16x64xf32>
    %183 = arith.mulf %182, %181 : vector<16x64xf32>
    %cst_61 = arith.constant 0.707106769 : f32
    %184 = vector.broadcast %cst_61 : f32 to vector<16x64xf32>
    %185 = arith.mulf %181, %184 : vector<16x64xf32>
    %186 = math.erf %185 : vector<16x64xf32>
    %cst_62 = arith.constant 1.000000e+00 : f32
    %187 = vector.broadcast %cst_62 : f32 to vector<16x64xf32>
    %188 = arith.addf %187, %186 : vector<16x64xf32>
    %189 = arith.mulf %183, %188 : vector<16x64xf32>
    %190 = arith.truncf %189 : vector<16x64xf32> to vector<16x64xbf16>
    %c0_63 = arith.constant 0 : index
    %c0_64 = arith.constant 0 : index
    %191 = vector.load %arg12[%c0_63, %c0_64] : memref<64x32xbf16, #tpu.memory_space<vmem>>, vector<64x32xbf16>
    %cst_65 = arith.constant dense<0.000000e+00> : vector<16x32xf32>
    %192 = tpu.matmul %190, %191, %cst_65 {dimension_numbers = #tpu.dot_dimension_numbers<[1], [0], [0], [1], [0, 0, 1, 1], [], []>} : vector<16x64xbf16>, vector<64x32xbf16>, vector<16x32xf32> -> vector<16x32xf32>
    %c0_66 = arith.constant 0 : index
    %c0_67 = arith.constant 0 : index
    %193 = vector.load %arg13[%c0_66, %c0_67] : memref<1x32xf32, #tpu.memory_space<vmem>>, vector<1x32xf32>
    %194 = vector.broadcast %193 : vector<1x32xf32> to vector<16x32xf32>
    %195 = arith.addf %192, %194 : vector<16x32xf32>
    %196 = arith.addf %195, %175 : vector<16x32xf32>
    %c0_68 = arith.constant 0 : index
    %c0_69 = arith.constant 0 : index
    %197 = vector.load %arg14[%c0_68, %c0_69] : memref<1x32xf32, #tpu.memory_space<vmem>>, vector<1x32xf32>
    %c0_70 = arith.constant 0 : index
    %c0_71 = arith.constant 0 : index
    %198 = vector.load %arg15[%c0_70, %c0_71] : memref<1x32xf32, #tpu.memory_space<vmem>>, vector<1x32xf32>
    %cst_72 = arith.constant dense<0.000000e+00> : vector<16xf32>
    %199 = vector.multi_reduction <add>, %196, %cst_72 [1] : vector<16x32xf32> to vector<16xf32>
    %200 = vector.shape_cast %199 : vector<16xf32> to vector<16x1xf32>
    %cst_73 = arith.constant 3.200000e+01 : f32
    %201 = vector.broadcast %cst_73 : f32 to vector<16x1xf32>
    %202 = arith.divf %200, %201 : vector<16x1xf32>
    %203 = vector.broadcast %202 : vector<16x1xf32> to vector<16x32xf32>
    %204 = arith.subf %196, %203 : vector<16x32xf32>
    %205 = arith.mulf %204, %204 : vector<16x32xf32>
    %cst_74 = arith.constant dense<0.000000e+00> : vector<16xf32>
    %206 = vector.multi_reduction <add>, %205, %cst_74 [1] : vector<16x32xf32> to vector<16xf32>
    %207 = vector.shape_cast %206 : vector<16xf32> to vector<16x1xf32>
    %cst_75 = arith.constant 3.200000e+01 : f32
    %208 = vector.broadcast %cst_75 : f32 to vector<16x1xf32>
    %209 = arith.divf %207, %208 : vector<16x1xf32>
    %210 = vector.broadcast %202 : vector<16x1xf32> to vector<16x32xf32>
    %211 = arith.subf %196, %210 : vector<16x32xf32>
    %cst_76 = arith.constant 9.99999996E-13 : f32
    %212 = vector.broadcast %cst_76 : f32 to vector<16x1xf32>
    %213 = arith.addf %209, %212 : vector<16x1xf32>
    %214 = math.rsqrt %213 : vector<16x1xf32>
    %215 = vector.broadcast %214 : vector<16x1xf32> to vector<16x32xf32>
    %216 = arith.mulf %211, %215 : vector<16x32xf32>
    %217 = vector.broadcast %197 : vector<1x32xf32> to vector<16x32xf32>
    %218 = arith.mulf %216, %217 : vector<16x32xf32>
    %219 = vector.broadcast %198 : vector<1x32xf32> to vector<16x32xf32>
    %220 = arith.addf %218, %219 : vector<16x32xf32>
    %c0_77 = arith.constant 0 : index
    %c0_78 = arith.constant 0 : index
    %221 = vector.load %arg16[%c0_77, %c0_78] : memref<16x32xf32, #tpu.memory_space<vmem>>, vector<16x32xf32>
    tpu.vector_store %arg16[%c0_77, %c0_78], %220 {strides = array<i32>} : memref<16x32xf32, #tpu.memory_space<vmem>>, vector<16x32xf32>,
    return
  }
}

</mosaic_0001>

<llo_original>
// kernel: tpu_custom_call.1
$region0: #{tpu_custom_call.1}
  #allocation0 [shape = 'u32[]', space=smem, size = 0x4, offset = 0x4, fixed_abs, tag = 'smem constant byte address 0x4 - core index']
  #allocation1 [shape = 'u32[72,128]{1,0:T(1,128)}', space=vmem, size = 0x9000, scoped, tag = 'internal scratch']
  %s0 = inlined_call_operand.vmem [shape: f32[16,32], index: 0, kind: input, shape index: {}]
  %s1 = inlined_call_operand.hbm [shape: f32[2,1,8], index: 1, kind: input, shape index: {}]
  %s2 = inlined_call_operand.vmem [shape: f32[1,32], index: 2, kind: input, shape index: {}]
  %s3 = inlined_call_operand.vmem [shape: f32[1,32], index: 3, kind: input, shape index: {}]
  %s4 = inlined_call_operand.vmem [shape: bf16[32,96], index: 4, kind: input, shape index: {}]
  %s5 = inlined_call_operand.vmem [shape: f32[1,96], index: 5, kind: input, shape index: {}]
  %s6 = inlined_call_operand.vmem [shape: bf16[32,32], index: 6, kind: input, shape index: {}]
  %s7 = inlined_call_operand.vmem [shape: f32[1,32], index: 7, kind: input, shape index: {}]
  %s8 = inlined_call_operand.vmem [shape: f32[1,32], index: 8, kind: input, shape index: {}]
  %s9 = inlined_call_operand.vmem [shape: f32[1,32], index: 9, kind: input, shape index: {}]
  %s10 = inlined_call_operand.hbm [shape: bf16[32,64], index: 10, kind: input, shape index: {}]
  %s11 = inlined_call_operand.vmem [shape: f32[1,64], index: 11, kind: input, shape index: {}]
  %s12 = inlined_call_operand.vmem [shape: bf16[64,32], index: 12, kind: input, shape index: {}]
  %s13 = inlined_call_operand.vmem [shape: f32[1,32], index: 13, kind: input, shape index: {}]
  %s14 = inlined_call_operand.vmem [shape: f32[1,32], index: 14, kind: input, shape index: {}]
  %s15 = inlined_call_operand.vmem [shape: f32[1,32], index: 15, kind: input, shape index: {}]
  %s16 = inlined_call_operand.hbm [shape: f32[16,32], index: 16, kind: output, shape index: {}]
  %s17 = sld [smem:[#allocation0]]
  $region82: #{tpu_custom_call.1} parent=0
    _
  %s19 = ssub.s32 1, %s17
  %s20 = scalar_select 0, %s19, %s17
  $region1: #{tpu_custom_call.1} parent=0
    #allocation2 [shape = 'u8[1024]{0}', space=vmem, size = 0x400, scoped, tag = 'input window, operand 1, single buffered']
    #allocation3 [shape = 's32[1]{0}', space=sflag, size = 0x4, scoped, tag = 'scoped memory for tpu_custom_call.1']
    #allocation4 [shape = 's32[1]{0}', space=sflag, size = 0x4, scoped, tag = 'scoped memory for tpu_custom_call.1']
    #allocation5 [shape = 'u8[8192]{0}', space=vmem, size = 0x2000, scoped, tag = 'input window, operand 10, single buffered']
    #allocation6 [shape = 's32[1]{0}', space=sflag, size = 0x4, scoped, tag = 'scoped memory for tpu_custom_call.1']
    #allocation7 [shape = 'u8[8192]{0}', space=vmem, size = 0x2000, scoped, tag = 'output window, operand 0, single buffered']
    %21 = vsyncpa [#allocation3], 0
    %22 = vsyncpa [#allocation6], 0
    %23 = vsyncpa [#allocation4], 0
    // Predicated region
    $region2: #{tpu_custom_call.1} parent=1 // pred_check
      _
    $region3: #{tpu_custom_call.1} parent=1 // pred_check_branch
      %25 = sbr.rel (0) target = $region5
    $region4: #{tpu_custom_call.1} parent=1 // pred_region
      _
    $region5: #{tpu_custom_call.1} parent=1 // pred_fallthru
      _
    // Predicated region
    $region6: #{tpu_custom_call.1} parent=1 // pred_check
      _
    $region7: #{tpu_custom_call.1} parent=1 // pred_check_branch
      %27 = sbr.rel (0) target = $region9
    $region8: #{tpu_custom_call.1} parent=1 // pred_region
      %29 = vsyncadd [#allocation3], 0
      %s30 = sshll.u32 %s1, 4
      %s31 = int_to_ptr.hbm [resolvable:$true] %s30
      %s32 = sshll.u32 [#allocation2], 4
      %s33 = int_to_ptr.vmem [resolvable:$true] %s32
      %38 = dma.hbm_to_vmem [thread:$0]  %s31, 32, %s33, [#allocation3], 16, 16, 1
    $region9: #{tpu_custom_call.1} parent=1 // pred_fallthru
      _
    // Predicated region
    $region10: #{tpu_custom_call.1} parent=1 // pred_check
      _
    $region11: #{tpu_custom_call.1} parent=1 // pred_check_branch
      %40 = sbr.rel (0) target = $region13
    $region12: #{tpu_custom_call.1} parent=1 // pred_region
      _
    $region13: #{tpu_custom_call.1} parent=1 // pred_fallthru
      _
    // Predicated region
    $region14: #{tpu_custom_call.1} parent=1 // pred_check
      _
    $region15: #{tpu_custom_call.1} parent=1 // pred_check_branch
      %42 = sbr.rel (0) target = $region17
    $region16: #{tpu_custom_call.1} parent=1 // pred_region
      _
    $region17: #{tpu_custom_call.1} parent=1 // pred_fallthru
      _
    // Predicated region
    $region18: #{tpu_custom_call.1} parent=1 // pred_check
      _
    $region19: #{tpu_custom_call.1} parent=1 // pred_check_branch
      %44 = sbr.rel (0) target = $region21
    $region20: #{tpu_custom_call.1} parent=1 // pred_region
      _
    $region21: #{tpu_custom_call.1} parent=1 // pred_fallthru
      _
    // Predicated region
    $region22: #{tpu_custom_call.1} parent=1 // pred_check
      _
    $region23: #{tpu_custom_call.1} parent=1 // pred_check_branch
      %46 = sbr.rel (0) target = $region25
    $region24: #{tpu_custom_call.1} parent=1 // pred_region
      _
    $region25: #{tpu_custom_call.1} parent=1 // pred_fallthru
      _
    // Predicated region
    $region26: #{tpu_custom_call.1} parent=1 // pred_check
      _
    $region27: #{tpu_custom_call.1} parent=1 // pred_check_branch
      %48 = sbr.rel (0) target = $region29
    $region28: #{tpu_custom_call.1} parent=1 // pred_region
      _
    $region29: #{tpu_custom_call.1} parent=1 // pred_fallthru
      _
    // Predicated region
    $region30: #{tpu_custom_call.1} parent=1 // pred_check
      _
    $region31: #{tpu_custom_call.1} parent=1 // pred_check_branch
      %50 = sbr.rel (0) target = $region33
    $region32: #{tpu_custom_call.1} parent=1 // pred_region
      _
    $region33: #{tpu_custom_call.1} parent=1 // pred_fallthru
      _
    // Predicated region
    $region34: #{tpu_custom_call.1} parent=1 // pred_check
      _
    $region35: #{tpu_custom_call.1} parent=1 // pred_check_branch
      %52 = sbr.rel (0) target = $region37
    $region36: #{tpu_custom_call.1} parent=1 // pred_region
      _
    $region37: #{tpu_custom_call.1} parent=1 // pred_fallthru
      _
    // Predicated region
    $region38: #{tpu_custom_call.1} parent=1 // pred_check
      _
    $region39: #{tpu_custom_call.1} parent=1 // pred_check_branch
      %54 = sbr.rel (0) target = $region41
    $region40: #{tpu_custom_call.1} parent=1 // pred_region
      _
    $region41: #{tpu_custom_call.1} parent=1 // pred_fallthru
      _
    // Predicated region
    $region42: #{tpu_custom_call.1} parent=1 // pred_check
      _
    $region43: #{tpu_custom_call.1} parent=1 // pred_check_branch
      %56 = sbr.rel (0) target = $region45
    $region44: #{tpu_custom_call.1} parent=1 // pred_region
      %58 = vsyncadd [#allocation6], 0
      %s59 = sshll.u32 %s10, 4
      %s60 = int_to_ptr.hbm [resolvable:$true] %s59
      %s61 = sshll.u32 [#allocation5], 4
      %s62 = int_to_ptr.vmem [resolvable:$true] %s61
      %67 = dma.hbm_to_vmem [thread:$0]  %s60, 256, %s62, [#allocation6], 64, 64, 4
    $region45: #{tpu_custom_call.1} parent=1 // pred_fallthru
      _
    // Predicated region
    $region46: #{tpu_custom_call.1} parent=1 // pred_check
      _
    $region47: #{tpu_custom_call.1} parent=1 // pred_check_branch
      %69 = sbr.rel (0) target = $region49
    $region48: #{tpu_custom_call.1} parent=1 // pred_region
      _
    $region49: #{tpu_custom_call.1} parent=1 // pred_fallthru
      _
    // Predicated region
    $region50: #{tpu_custom_call.1} parent=1 // pred_check
      _
    $region51: #{tpu_custom_call.1} parent=1 // pred_check_branch
      %71 = sbr.rel (0) target = $region53
    $region52: #{tpu_custom_call.1} parent=1 // pred_region
      _
    $region53: #{tpu_custom_call.1} parent=1 // pred_fallthru
      _
    // Predicated region
    $region54: #{tpu_custom_call.1} parent=1 // pred_check
      _
    $region55: #{tpu_custom_call.1} parent=1 // pred_check_branch
      %73 = sbr.rel (0) target = $region57
    $region56: #{tpu_custom_call.1} parent=1 // pred_region
      _
    $region57: #{tpu_custom_call.1} parent=1 // pred_fallthru
      _
    // Predicated region
    $region58: #{tpu_custom_call.1} parent=1 // pred_check
      _
    $region59: #{tpu_custom_call.1} parent=1 // pred_check_branch
      %75 = sbr.rel (0) target = $region61
    $region60: #{tpu_custom_call.1} parent=1 // pred_region
      _
    $region61: #{tpu_custom_call.1} parent=1 // pred_fallthru
      _
    // Predicated region
    $region62: #{tpu_custom_call.1} parent=1 // pred_check
      _
    $region63: #{tpu_custom_call.1} parent=1 // pred_check_branch
      %77 = sbr.rel (0) target = $region65
    $region64: #{tpu_custom_call.1} parent=1 // pred_region
      _
    $region65: #{tpu_custom_call.1} parent=1 // pred_fallthru
      _
    // Predicated region
    $region66: #{tpu_custom_call.1} parent=1 // pred_check
      _
    $region67: #{tpu_custom_call.1} parent=1 // pred_check_branch
      %79 = sbr.rel (0) target = $region69
    $region68: #{tpu_custom_call.1} parent=1 // pred_region
      %81 = dma.done [#allocation3], 32
    $region69: #{tpu_custom_call.1} parent=1 // pred_fallthru
      _
    // Predicated region
    $region70: #{tpu_custom_call.1} parent=1 // pred_check
      _
    $region71: #{tpu_custom_call.1} parent=1 // pred_check_branch
      %83 = sbr.rel (0) target = $region73
    $region72: #{tpu_custom_call.1} parent=1 // pred_region
      %85 = dma.done [#allocation6], 256
    $region73: #{tpu_custom_call.1} parent=1 // pred_fallthru
      _
    %v87 = vld [vmem:[%s0] sm:$0xff]
    %v88 = vld [vmem:[%s0 + $0x8] sm:$0xff]
    %v89 = vld [vmem:[%s2] sm:$0x1]
    %v90 = vld [vmem:[%s3] sm:$0x1]
    %vm91 = vcmask 261120
    %v92 = vsel %vm91, %v87, 0.0
    %93 = vadd.xlane.f32.xlu0 %v92
    %v94 = vpop.xlane.xlu0 %93
    %v95 = vsel %vm91, %v88, 0.0
    %96 = vadd.xlane.f32.xlu0 %v95
    %v97 = vpop.xlane.xlu0 %96
    %v98 = vrcp.pop 32.0
    %v99 = vmul.f32 32.0, %v98
    %v100 = vsub.f32 1.0, %v99
    %v101 = vmul.f32 %v98, %v100
    %v102 = vadd.f32 %v98, %v101
    %vm103 = vweird.f32 %v98
    %v104 = vsel %vm103, %v98, %v102
    %v105 = vmul.f32 %v94, %v104
    %v106 = vmul.f32 %v97, %v104
    %v107 = vsub.f32 %v87, %v105
    %v108 = vsub.f32 %v88, %v106
    %v109 = vmul.f32 %v107, %v107
    %v110 = vmul.f32 %v108, %v108
    %v111 = vsel %vm91, %v109, 0.0
    %112 = vadd.xlane.f32.xlu0 %v111
    %v113 = vpop.xlane.xlu0 %112
    %v114 = vsel %vm91, %v110, 0.0
    %115 = vadd.xlane.f32.xlu0 %v114
    %v116 = vpop.xlane.xlu0 %115
    %v117 = vmul.f32 %v113, %v104
    %v118 = vmul.f32 %v116, %v104
    %v119 = vadd.f32 %v117, 1e-12
    %v120 = vadd.f32 %v118, 1e-12
    %v121 = vrsqrt.pop %v119
    %v122 = vmul.f32 %v121, %v119
    %v123 = vmul.f32 %v122, %v121
    %v124 = vmul.f32 0.5, %v123
    %v125 = vsub.f32 1.5, %v124
    %v126 = vmul.f32 %v121, %v125
    %vm127 = vweird.f32 %v119
    %vm128 = vweird.f32 %v121
    %vm129 = vmor %vm127, %vm128
    %v130 = vsel %vm129, %v121, %v126
    %v131 = vrsqrt.pop %v120
    %v132 = vmul.f32 %v131, %v120
    %v133 = vmul.f32 %v132, %v131
    %v134 = vmul.f32 0.5, %v133
    %v135 = vsub.f32 1.5, %v134
    %v136 = vmul.f32 %v131, %v135
    %vm137 = vweird.f32 %v120
    %vm138 = vweird.f32 %v131
    %vm139 = vmor %vm137, %vm138
    %v140 = vsel %vm139, %v131, %v136
    %v141 = vmul.f32 %v107, %v130
    %v142 = vmul.f32 %v108, %v140
    %v144 = vperm.slane %v89, 0
    %v146 = vmul.f32 %v141, %v144
    %v147 = vmul.f32 %v142, %v144
    %v149 = vperm.slane %v90, 0
    %v151 = vadd.f32 %v146, %v149
    %v152 = vadd.f32 %v147, %v149
    %v153 = vpack.c.bf16 %v152, %v151
    %v154 = vld [vmem:[%s4] sm:$0xf]
    %v155 = vld [vmem:[%s4 + $0x4] sm:$0xf]
    %v156 = vld [vmem:[%s4 + $0x8] sm:$0xf]
    %v157 = vld [vmem:[%s4 + $0xc] sm:$0xf]
    %v158 = vld [vmem:[%s5] sm:$0x1]
    %v160 = vperm.slane %v158, 0
    %v166 = vunpack.c.l.b16 %v154
    %v167 = vunpack.c.l.b16 %v155
    %v168 = vunpack.c.l.b16 %v156
    %v169 = vunpack.c.l.b16 %v157
    %v170 = vpack.c.b16 %v167, %v166
    %v171 = vpack.c.b16 %v169, %v168
    %v175 = vsel %vm91, %v153, 0
    %177 = vmatpush.bf16.msra.mxu0 0
    %178 = vmatpush.bf16.msra.mxu0 0
    %179 = vmatpush.bf16.msra.mxu0 0
    %180 = vmatpush.bf16.msra.mxu0 0
    %181 = vmatpush.bf16.msra.mxu0 0
    %182 = vmatpush.bf16.msra.mxu0 0
    %183 = vmatpush.bf16.msra.mxu0 %v171
    %184 = vmatpush.bf16.msra.mxu0 %v170
    %185 = vmatmul.bf16.gmra.mxu0 %v175
    %v186 = vpop.f32.mrf.mxu0
    %v187 = vadd.f32 %v160, %v186
    %v188 = vpop.f32.mrf.mxu0
    %v189 = vadd.f32 %v160, %v188
    %190 = vdwg.mxu0
    %v191 = vpack.c.bf16 %v187, %v187
    %v192 = vpack.c.bf16 %v189, %v189
    %v193 = vld [vmem:[#allocation2] sm:$0x1]
    %v194 = vld [vmem:[#allocation2 + $0x1] sm:$0x1]
    %v195 = vld [vmem:[%s6] sm:$0xf]
    %v196 = vld [vmem:[%s6 + $0x4] sm:$0xf]
    %v197 = vld [vmem:[%s6 + $0x8] sm:$0xf]
    %v198 = vld [vmem:[%s6 + $0xc] sm:$0xf]
    %v200 = vunpack.c.l.b16 %v191
    %v201 = vpack.c.b16 %v200, %v200
    %202 = vrot.lane.b32.xlu0 %v201, 96
    %v203 = vpop.permute.xlu0 %202
    %vm204 = vcmask 64512
    %v206 = vsel %vm204, %v191, 0
    %v209 = vsel %vm204, %v203, 0
    %211 = vmatpush.bf16.xpose.msra.mxu0 0
    %212 = vmatpush.bf16.xpose.msra.mxu0 0
    %213 = vmatpush.bf16.xpose.msra.mxu0 0
    %214 = vmatpush.bf16.xpose.msra.mxu0 0
    %215 = vmatpush.bf16.xpose.msra.mxu0 0
    %216 = vmatpush.bf16.xpose.msra.mxu0 0
    %217 = vmatpush.bf16.xpose.msra.mxu0 0
    %218 = vmatpush.bf16.xpose.msra.mxu0 %v209
    %219 = vmatmul.bf16.gmra.mxu0 %v206
    %v220 = vpop.f32.mrf.mxu0
    %v221 = vadd.f32 0.0, %v220
    %v222 = vpop.f32.mrf.mxu0
    %223 = vdwg.mxu0
    %v225 = vunpack.c.l.b16 %v192
    %v226 = vpack.c.b16 %v225, %v225
    %227 = vrot.lane.b32.xlu0 %v226, 96
    %v228 = vpop.permute.xlu0 %227
    %v230 = vsel %vm204, %v192, 0
    %v233 = vsel %vm204, %v228, 0
    %235 = vmatpush.bf16.xpose.msra.mxu0 0
    %236 = vmatpush.bf16.xpose.msra.mxu0 0
    %237 = vmatpush.bf16.xpose.msra.mxu0 0
    %238 = vmatpush.bf16.xpose.msra.mxu0 0
    %239 = vmatpush.bf16.xpose.msra.mxu0 0
    %240 = vmatpush.bf16.xpose.msra.mxu0 0
    %241 = vmatpush.bf16.xpose.msra.mxu0 0
    %242 = vmatpush.bf16.xpose.msra.mxu0 %v233
    %243 = vmatmul.bf16.gmra.mxu0 %v230
    %v244 = vpop.f32.mrf.mxu0
    %v245 = vadd.f32 0.0, %v244
    %v246 = vpop.f32.mrf.mxu0
    %247 = vdwg.mxu0
    %v248 = vmul.f32 %v221, 0.35355338
    %v249 = vmul.f32 %v245, 0.35355338
    %v252 = vperm.slane %v193, 0
    %v253 = vperm.slane %v194, 0
    %v256 = vadd.f32 %v248, %v252
    %v257 = vadd.f32 %v249, %v253
    %v258 = vsel %vm204, %v256, -inf
    %259 = vmax.xlane.f32.xlu0 %v258
    %v260 = vpop.xlane.xlu0 %259
    %v261 = vsel %vm204, %v257, -inf
    %262 = vmax.xlane.f32.xlu0 %v261
    %v263 = vpop.xlane.xlu0 %262
    %v264 = vsub.f32 %v256, %v260
    %v265 = vsub.f32 %v257, %v263
    %v266 = vmul.f32 %v264, 1.442695
    %v267 = vpow.pop %v266
    %v268 = vmul.f32 %v265, 1.442695
    %v269 = vpow.pop %v268
    %v270 = vsel %vm204, %v267, 0.0
    %271 = vadd.xlane.f32.xlu0 %v270
    %v272 = vpop.xlane.xlu0 %271
    %v273 = vsel %vm204, %v269, 0.0
    %274 = vadd.xlane.f32.xlu0 %v273
    %v275 = vpop.xlane.xlu0 %274
    %v276 = vrcp.pop %v272
    %v277 = vmul.f32 %v272, %v276
    %v278 = vsub.f32 1.0, %v277
    %v279 = vmul.f32 %v276, %v278
    %v280 = vadd.f32 %v276, %v279
    %vm281 = vweird.f32 %v272
    %vm282 = vweird.f32 %v276
    %vm283 = vmor %vm281, %vm282
    %v284 = vsel %vm283, %v276, %v280
    %v285 = vand.u32 2147483647, %v272
    %vm286 = vcmp.eq.f32.partialorder %v285, 8.507059e+37
    %v287 = vand.u32 %v272, 2147483648
    %v288 = vor.u32 1.1754944e-38, %v287
    %v289 = vsel %vm286, %v288, %v284
    %v290 = vmul.f32 %v267, %v289
    %v291 = vrcp.pop %v275
    %v292 = vmul.f32 %v275, %v291
    %v293 = vsub.f32 1.0, %v292
    %v294 = vmul.f32 %v291, %v293
    %v295 = vadd.f32 %v291, %v294
    %vm296 = vweird.f32 %v275
    %vm297 = vweird.f32 %v291
    %vm298 = vmor %vm296, %vm297
    %v299 = vsel %vm298, %v291, %v295
    %v300 = vand.u32 2147483647, %v275
    %vm301 = vcmp.eq.f32.partialorder %v300, 8.507059e+37
    %v302 = vand.u32 %v275, 2147483648
    %v303 = vor.u32 1.1754944e-38, %v302
    %v304 = vsel %vm301, %v303, %v299
    %v305 = vmul.f32 %v269, %v304
    %v306 = vpack.c.bf16 %v290, %v290
    %v307 = vpack.c.bf16 %v305, %v305
    %308 = vrot.lane.b32.xlu0 %v201, 64
    %v309 = vpop.permute.xlu0 %308
    %v311 = vsel %vm204, %v306, 0
    %vm313 = vcmask 1043456
    %v315 = vsel %vm313, %v309, 0
    %317 = vmatpush.bf16.msra.mxu0 0
    %318 = vmatpush.bf16.msra.mxu0 0
    %319 = vmatpush.bf16.msra.mxu0 0
    %320 = vmatpush.bf16.msra.mxu0 0
    %321 = vmatpush.bf16.msra.mxu0 0
    %322 = vmatpush.bf16.msra.mxu0 0
    %323 = vmatpush.bf16.msra.mxu0 0
    %324 = vmatpush.bf16.msra.mxu0 %v315
    %325 = vmatmul.bf16.gmra.mxu0 %v311
    %v326 = vpop.f32.mrf.mxu0
    %v327 = vadd.f32 0.0, %v326
    %v328 = vpop.f32.mrf.mxu0
    %329 = vdwg.mxu0
    %330 = vrot.lane.b32.xlu0 %v226, 64
    %v331 = vpop.permute.xlu0 %330
    %v333 = vsel %vm204, %v307, 0
    %v336 = vsel %vm313, %v331, 0
    %338 = vmatpush.bf16.msra.mxu0 0
    %339 = vmatpush.bf16.msra.mxu0 0
    %340 = vmatpush.bf16.msra.mxu0 0
    %341 = vmatpush.bf16.msra.mxu0 0
    %342 = vmatpush.bf16.msra.mxu0 0
    %343 = vmatpush.bf16.msra.mxu0 0
    %344 = vmatpush.bf16.msra.mxu0 0
    %345 = vmatpush.bf16.msra.mxu0 %v336
    %346 = vmatmul.bf16.gmra.mxu0 %v333
    %v347 = vpop.f32.mrf.mxu0
    %v348 = vadd.f32 0.0, %v347
    %v349 = vpop.f32.mrf.mxu0
    %350 = vdwg.mxu0
    %v351 = vpack.c.bf16 %v348, %v327
    %352 = vrot.lane.b32.xlu0 %v201, 120
    %v353 = vpop.permute.xlu0 %352
    %354 = vrot.lane.b32.xlu0 %v201, 88
    %v355 = vpop.permute.xlu0 %354
    %v357 = vsel %vm204, %v353, 0
    %v360 = vsel %vm204, %v355, 0
    %362 = vmatpush.bf16.xpose.msra.mxu0 0
    %363 = vmatpush.bf16.xpose.msra.mxu0 0
    %364 = vmatpush.bf16.xpose.msra.mxu0 0
    %365 = vmatpush.bf16.xpose.msra.mxu0 0
    %366 = vmatpush.bf16.xpose.msra.mxu0 0
    %367 = vmatpush.bf16.xpose.msra.mxu0 0
    %368 = vmatpush.bf16.xpose.msra.mxu0 0
    %369 = vmatpush.bf16.xpose.msra.mxu0 %v360
    %370 = vmatmul.bf16.gmra.mxu0 %v357
    %v371 = vpop.f32.mrf.mxu0
    %v372 = vadd.f32 0.0, %v371
    %v373 = vpop.f32.mrf.mxu0
    %374 = vdwg.mxu0
    %375 = vrot.lane.b32.xlu0 %v226, 120
    %v376 = vpop.permute.xlu0 %375
    %377 = vrot.lane.b32.xlu0 %v226, 88
    %v378 = vpop.permute.xlu0 %377
    %v380 = vsel %vm204, %v376, 0
    %v383 = vsel %vm204, %v378, 0
    %385 = vmatpush.bf16.xpose.msra.mxu0 0
    %386 = vmatpush.bf16.xpose.msra.mxu0 0
    %387 = vmatpush.bf16.xpose.msra.mxu0 0
    %388 = vmatpush.bf16.xpose.msra.mxu0 0
    %389 = vmatpush.bf16.xpose.msra.mxu0 0
    %390 = vmatpush.bf16.xpose.msra.mxu0 0
    %391 = vmatpush.bf16.xpose.msra.mxu0 0
    %392 = vmatpush.bf16.xpose.msra.mxu0 %v383
    %393 = vmatmul.bf16.gmra.mxu0 %v380
    %v394 = vpop.f32.mrf.mxu0
    %v395 = vadd.f32 0.0, %v394
    %v396 = vpop.f32.mrf.mxu0
    %397 = vdwg.mxu0
    %v398 = vmul.f32 %v372, 0.35355338
    %v399 = vmul.f32 %v395, 0.35355338
    %v400 = vadd.f32 %v398, %v252
    %v401 = vadd.f32 %v399, %v253
    %v402 = vsel %vm204, %v400, -inf
    %403 = vmax.xlane.f32.xlu0 %v402
    %v404 = vpop.xlane.xlu0 %403
    %v405 = vsel %vm204, %v401, -inf
    %406 = vmax.xlane.f32.xlu0 %v405
    %v407 = vpop.xlane.xlu0 %406
    %v408 = vsub.f32 %v400, %v404
    %v409 = vsub.f32 %v401, %v407
    %v410 = vmul.f32 %v408, 1.442695
    %v411 = vpow.pop %v410
    %v412 = vmul.f32 %v409, 1.442695
    %v413 = vpow.pop %v412
    %v414 = vsel %vm204, %v411, 0.0
    %415 = vadd.xlane.f32.xlu0 %v414
    %v416 = vpop.xlane.xlu0 %415
    %v417 = vsel %vm204, %v413, 0.0
    %418 = vadd.xlane.f32.xlu0 %v417
    %v419 = vpop.xlane.xlu0 %418
    %v420 = vrcp.pop %v416
    %v421 = vmul.f32 %v416, %v420
    %v422 = vsub.f32 1.0, %v421
    %v423 = vmul.f32 %v420, %v422
    %v424 = vadd.f32 %v420, %v423
    %vm425 = vweird.f32 %v416
    %vm426 = vweird.f32 %v420
    %vm427 = vmor %vm425, %vm426
    %v428 = vsel %vm427, %v420, %v424
    %v429 = vand.u32 2147483647, %v416
    %vm430 = vcmp.eq.f32.partialorder %v429, 8.507059e+37
    %v431 = vand.u32 %v416, 2147483648
    %v432 = vor.u32 1.1754944e-38, %v431
    %v433 = vsel %vm430, %v432, %v428
    %v434 = vmul.f32 %v411, %v433
    %v435 = vrcp.pop %v419
    %v436 = vmul.f32 %v419, %v435
    %v437 = vsub.f32 1.0, %v436
    %v438 = vmul.f32 %v435, %v437
    %v439 = vadd.f32 %v435, %v438
    %vm440 = vweird.f32 %v419
    %vm441 = vweird.f32 %v435
    %vm442 = vmor %vm440, %vm441
    %v443 = vsel %vm442, %v435, %v439
    %v444 = vand.u32 2147483647, %v419
    %vm445 = vcmp.eq.f32.partialorder %v444, 8.507059e+37
    %v446 = vand.u32 %v419, 2147483648
    %v447 = vor.u32 1.1754944e-38, %v446
    %v448 = vsel %vm445, %v447, %v443
    %v449 = vmul.f32 %v413, %v448
    %v450 = vpack.c.bf16 %v434, %v434
    %v451 = vpack.c.bf16 %v449, %v449
    %452 = vrot.lane.b32.xlu0 %v201, 56
    %v453 = vpop.permute.xlu0 %452
    %v455 = vsel %vm204, %v450, 0
    %v458 = vsel %vm313, %v453, 0
    %460 = vmatpush.bf16.msra.mxu0 0
    %461 = vmatpush.bf16.msra.mxu0 0
    %462 = vmatpush.bf16.msra.mxu0 0
    %463 = vmatpush.bf16.msra.mxu0 0
    %464 = vmatpush.bf16.msra.mxu0 0
    %465 = vmatpush.bf16.msra.mxu0 0
    %466 = vmatpush.bf16.msra.mxu0 0
    %467 = vmatpush.bf16.msra.mxu0 %v458
    %468 = vmatmul.bf16.gmra.mxu0 %v455
    %v469 = vpop.f32.mrf.mxu0
    %v470 = vadd.f32 0.0, %v469
    %v471 = vpop.f32.mrf.mxu0
    %472 = vdwg.mxu0
    %473 = vrot.lane.b32.xlu0 %v226, 56
    %v474 = vpop.permute.xlu0 %473
    %v476 = vsel %vm204, %v451, 0
    %v479 = vsel %vm313, %v474, 0
    %481 = vmatpush.bf16.msra.mxu0 0
    %482 = vmatpush.bf16.msra.mxu0 0
    %483 = vmatpush.bf16.msra.mxu0 0
    %484 = vmatpush.bf16.msra.mxu0 0
    %485 = vmatpush.bf16.msra.mxu0 0
    %486 = vmatpush.bf16.msra.mxu0 0
    %487 = vmatpush.bf16.msra.mxu0 0
    %488 = vmatpush.bf16.msra.mxu0 %v479
    %489 = vmatmul.bf16.gmra.mxu0 %v476
    %v490 = vpop.f32.mrf.mxu0
    %v491 = vadd.f32 0.0, %v490
    %v492 = vpop.f32.mrf.mxu0
    %493 = vdwg.mxu0
    %v494 = vpack.c.bf16 %v491, %v470
    %v496 = vsel %vm204, %v494, 0
    %v499 = vsel %vm313, %v196, 0
    %501 = vmatpush.bf16.msra.mxu0 0
    %502 = vmatpush.bf16.msra.mxu0 0
    %503 = vmatpush.bf16.msra.mxu0 0
    %504 = vmatpush.bf16.msra.mxu0 0
    %505 = vmatpush.bf16.msra.mxu0 0
    %506 = vmatpush.bf16.msra.mxu0 0
    %507 = vmatpush.bf16.msra.mxu0 0
    %508 = vmatpush.bf16.msra.mxu0 %v499
    %509 = vmatmul.bf16.gmra.mxu0 %v496
    %v510 = vpop.f32.mrf.mxu0
    %v511 = vadd.f32 0.0, %v510
    %v512 = vpop.f32.mrf.mxu0
    %v513 = vadd.f32 0.0, %v512
    %514 = vdwg.mxu0
    %v516 = vsel %vm204, %v351, 0
    %v519 = vsel %vm313, %v195, 0
    %521 = vmatpush.bf16.msra.mxu0 0
    %522 = vmatpush.bf16.msra.mxu0 0
    %523 = vmatpush.bf16.msra.mxu0 0
    %524 = vmatpush.bf16.msra.mxu0 0
    %525 = vmatpush.bf16.msra.mxu0 0
    %526 = vmatpush.bf16.msra.mxu0 0
    %527 = vmatpush.bf16.msra.mxu0 0
    %528 = vmatpush.bf16.msra.mxu0 %v519
    %529 = vmatmul.bf16.gmra.mxu0 %v516
    %v530 = vpop.f32.mrf.mxu0
    %v531 = vadd.f32 %v511, %v530
    %v532 = vpop.f32.mrf.mxu0
    %v533 = vadd.f32 %v513, %v532
    %534 = vdwg.mxu0
    %535 = vrot.lane.b32.xlu0 %v201, 112
    %v536 = vpop.permute.xlu0 %535
    %537 = vrot.lane.b32.xlu0 %v201, 80
    %v538 = vpop.permute.xlu0 %537
    %v540 = vsel %vm204, %v536, 0
    %v543 = vsel %vm204, %v538, 0
    %545 = vmatpush.bf16.xpose.msra.mxu0 0
    %546 = vmatpush.bf16.xpose.msra.mxu0 0
    %547 = vmatpush.bf16.xpose.msra.mxu0 0
    %548 = vmatpush.bf16.xpose.msra.mxu0 0
    %549 = vmatpush.bf16.xpose.msra.mxu0 0
    %550 = vmatpush.bf16.xpose.msra.mxu0 0
    %551 = vmatpush.bf16.xpose.msra.mxu0 0
    %552 = vmatpush.bf16.xpose.msra.mxu0 %v543
    %553 = vmatmul.bf16.gmra.mxu0 %v540
    %v554 = vpop.f32.mrf.mxu0
    %v555 = vadd.f32 0.0, %v554
    %v556 = vpop.f32.mrf.mxu0
    %557 = vdwg.mxu0
    %558 = vrot.lane.b32.xlu0 %v226, 112
    %v559 = vpop.permute.xlu0 %558
    %560 = vrot.lane.b32.xlu0 %v226, 80
    %v561 = vpop.permute.xlu0 %560
    %v563 = vsel %vm204, %v559, 0
    %v566 = vsel %vm204, %v561, 0
    %568 = vmatpush.bf16.xpose.msra.mxu0 0
    %569 = vmatpush.bf16.xpose.msra.mxu0 0
    %570 = vmatpush.bf16.xpose.msra.mxu0 0
    %571 = vmatpush.bf16.xpose.msra.mxu0 0
    %572 = vmatpush.bf16.xpose.msra.mxu0 0
    %573 = vmatpush.bf16.xpose.msra.mxu0 0
    %574 = vmatpush.bf16.xpose.msra.mxu0 0
    %575 = vmatpush.bf16.xpose.msra.mxu0 %v566
    %576 = vmatmul.bf16.gmra.mxu0 %v563
    %v577 = vpop.f32.mrf.mxu0
    %v578 = vadd.f32 0.0, %v577
    %v579 = vpop.f32.mrf.mxu0
    %580 = vdwg.mxu0
    %v581 = vmul.f32 %v555, 0.35355338
    %v582 = vmul.f32 %v578, 0.35355338
    %v583 = vadd.f32 %v581, %v252
    %v584 = vadd.f32 %v582, %v253
    %v585 = vsel %vm204, %v583, -inf
    %586 = vmax.xlane.f32.xlu0 %v585
    %v587 = vpop.xlane.xlu0 %586
    %v588 = vsel %vm204, %v584, -inf
    %589 = vmax.xlane.f32.xlu0 %v588
    %v590 = vpop.xlane.xlu0 %589
    %v591 = vsub.f32 %v583, %v587
    %v592 = vsub.f32 %v584, %v590
    %v593 = vmul.f32 %v591, 1.442695
    %v594 = vpow.pop %v593
    %v595 = vmul.f32 %v592, 1.442695
    %v596 = vpow.pop %v595
    %v597 = vsel %vm204, %v594, 0.0
    %598 = vadd.xlane.f32.xlu0 %v597
    %v599 = vpop.xlane.xlu0 %598
    %v600 = vsel %vm204, %v596, 0.0
    %601 = vadd.xlane.f32.xlu0 %v600
    %v602 = vpop.xlane.xlu0 %601
    %v603 = vrcp.pop %v599
    %v604 = vmul.f32 %v599, %v603
    %v605 = vsub.f32 1.0, %v604
    %v606 = vmul.f32 %v603, %v605
    %v607 = vadd.f32 %v603, %v606
    %vm608 = vweird.f32 %v599
    %vm609 = vweird.f32 %v603
    %vm610 = vmor %vm608, %vm609
    %v611 = vsel %vm610, %v603, %v607
    %v612 = vand.u32 2147483647, %v599
    %vm613 = vcmp.eq.f32.partialorder %v612, 8.507059e+37
    %v614 = vand.u32 %v599, 2147483648
    %v615 = vor.u32 1.1754944e-38, %v614
    %v616 = vsel %vm613, %v615, %v611
    %v617 = vmul.f32 %v594, %v616
    %v618 = vrcp.pop %v602
    %v619 = vmul.f32 %v602, %v618
    %v620 = vsub.f32 1.0, %v619
    %v621 = vmul.f32 %v618, %v620
    %v622 = vadd.f32 %v618, %v621
    %vm623 = vweird.f32 %v602
    %vm624 = vweird.f32 %v618
    %vm625 = vmor %vm623, %vm624
    %v626 = vsel %vm625, %v618, %v622
    %v627 = vand.u32 2147483647, %v602
    %vm628 = vcmp.eq.f32.partialorder %v627, 8.507059e+37
    %v629 = vand.u32 %v602, 2147483648
    %v630 = vor.u32 1.1754944e-38, %v629
    %v631 = vsel %vm628, %v630, %v626
    %v632 = vmul.f32 %v596, %v631
    %v633 = vpack.c.bf16 %v617, %v617
    %v634 = vpack.c.bf16 %v632, %v632
    %635 = vrot.lane.b32.xlu0 %v201, 48
    %v636 = vpop.permute.xlu0 %635
    %v638 = vsel %vm204, %v633, 0
    %v641 = vsel %vm313, %v636, 0
    %643 = vmatpush.bf16.msra.mxu0 0
    %644 = vmatpush.bf16.msra.mxu0 0
    %645 = vmatpush.bf16.msra.mxu0 0
    %646 = vmatpush.bf16.msra.mxu0 0
    %647 = vmatpush.bf16.msra.mxu0 0
    %648 = vmatpush.bf16.msra.mxu0 0
    %649 = vmatpush.bf16.msra.mxu0 0
    %650 = vmatpush.bf16.msra.mxu0 %v641
    %651 = vmatmul.bf16.gmra.mxu0 %v638
    %v652 = vpop.f32.mrf.mxu0
    %v653 = vadd.f32 0.0, %v652
    %v654 = vpop.f32.mrf.mxu0
    %655 = vdwg.mxu0
    %656 = vrot.lane.b32.xlu0 %v226, 48
    %v657 = vpop.permute.xlu0 %656
    %v659 = vsel %vm204, %v634, 0
    %v662 = vsel %vm313, %v657, 0
    %664 = vmatpush.bf16.msra.mxu0 0
    %665 = vmatpush.bf16.msra.mxu0 0
    %666 = vmatpush.bf16.msra.mxu0 0
    %667 = vmatpush.bf16.msra.mxu0 0
    %668 = vmatpush.bf16.msra.mxu0 0
    %669 = vmatpush.bf16.msra.mxu0 0
    %670 = vmatpush.bf16.msra.mxu0 0
    %671 = vmatpush.bf16.msra.mxu0 %v662
    %672 = vmatmul.bf16.gmra.mxu0 %v659
    %v673 = vpop.f32.mrf.mxu0
    %v674 = vadd.f32 0.0, %v673
    %v675 = vpop.f32.mrf.mxu0
    %676 = vdwg.mxu0
    %v677 = vpack.c.bf16 %v674, %v653
    %v679 = vsel %vm204, %v677, 0
    %v682 = vsel %vm313, %v197, 0
    %684 = vmatpush.bf16.msra.mxu0 0
    %685 = vmatpush.bf16.msra.mxu0 0
    %686 = vmatpush.bf16.msra.mxu0 0
    %687 = vmatpush.bf16.msra.mxu0 0
    %688 = vmatpush.bf16.msra.mxu0 0
    %689 = vmatpush.bf16.msra.mxu0 0
    %690 = vmatpush.bf16.msra.mxu0 0
    %691 = vmatpush.bf16.msra.mxu0 %v682
    %692 = vmatmul.bf16.gmra.mxu0 %v679
    %v693 = vpop.f32.mrf.mxu0
    %v694 = vadd.f32 0.0, %v693
    %v695 = vpop.f32.mrf.mxu0
    %v696 = vadd.f32 0.0, %v695
    %697 = vdwg.mxu0
    %v698 = vadd.f32 %v531, %v694
    %v699 = vadd.f32 %v533, %v696
    %700 = vrot.lane.b32.xlu0 %v201, 104
    %v701 = vpop.permute.xlu0 %700
    %702 = vrot.lane.b32.xlu0 %v201, 72
    %v703 = vpop.permute.xlu0 %702
    %v705 = vsel %vm204, %v701, 0
    %v708 = vsel %vm204, %v703, 0
    %710 = vmatpush.bf16.xpose.msra.mxu0 0
    %711 = vmatpush.bf16.xpose.msra.mxu0 0
    %712 = vmatpush.bf16.xpose.msra.mxu0 0
    %713 = vmatpush.bf16.xpose.msra.mxu0 0
    %714 = vmatpush.bf16.xpose.msra.mxu0 0
    %715 = vmatpush.bf16.xpose.msra.mxu0 0
    %716 = vmatpush.bf16.xpose.msra.mxu0 0
    %717 = vmatpush.bf16.xpose.msra.mxu0 %v708
    %718 = vmatmul.bf16.gmra.mxu0 %v705
    %v719 = vpop.f32.mrf.mxu0
    %v720 = vadd.f32 0.0, %v719
    %v721 = vpop.f32.mrf.mxu0
    %722 = vdwg.mxu0
    %723 = vrot.lane.b32.xlu0 %v226, 104
    %v724 = vpop.permute.xlu0 %723
    %725 = vrot.lane.b32.xlu0 %v226, 72
    %v726 = vpop.permute.xlu0 %725
    %v728 = vsel %vm204, %v724, 0
    %v731 = vsel %vm204, %v726, 0
    %733 = vmatpush.bf16.xpose.msra.mxu0 0
    %734 = vmatpush.bf16.xpose.msra.mxu0 0
    %735 = vmatpush.bf16.xpose.msra.mxu0 0
    %736 = vmatpush.bf16.xpose.msra.mxu0 0
    %737 = vmatpush.bf16.xpose.msra.mxu0 0
    %738 = vmatpush.bf16.xpose.msra.mxu0 0
    %739 = vmatpush.bf16.xpose.msra.mxu0 0
    %740 = vmatpush.bf16.xpose.msra.mxu0 %v731
    %741 = vmatmul.bf16.gmra.mxu0 %v728
    %v742 = vpop.f32.mrf.mxu0
    %v743 = vadd.f32 0.0, %v742
    %v744 = vpop.f32.mrf.mxu0
    %745 = vdwg.mxu0
    %v746 = vmul.f32 %v720, 0.35355338
    %v747 = vmul.f32 %v743, 0.35355338
    %v748 = vadd.f32 %v746, %v252
    %v749 = vadd.f32 %v747, %v253
    %v750 = vsel %vm204, %v748, -inf
    %751 = vmax.xlane.f32.xlu0 %v750
    %v752 = vpop.xlane.xlu0 %751
    %v753 = vsel %vm204, %v749, -inf
    %754 = vmax.xlane.f32.xlu0 %v753
    %v755 = vpop.xlane.xlu0 %754
    %v756 = vsub.f32 %v748, %v752
    %v757 = vsub.f32 %v749, %v755
    %v758 = vmul.f32 %v756, 1.442695
    %v759 = vpow.pop %v758
    %v760 = vmul.f32 %v757, 1.442695
    %v761 = vpow.pop %v760
    %v762 = vsel %vm204, %v759, 0.0
    %763 = vadd.xlane.f32.xlu0 %v762
    %v764 = vpop.xlane.xlu0 %763
    %v765 = vsel %vm204, %v761, 0.0
    %766 = vadd.xlane.f32.xlu0 %v765
    %v767 = vpop.xlane.xlu0 %766
    %v768 = vrcp.pop %v764
    %v769 = vmul.f32 %v764, %v768
    %v770 = vsub.f32 1.0, %v769
    %v771 = vmul.f32 %v768, %v770
    %v772 = vadd.f32 %v768, %v771
    %vm773 = vweird.f32 %v764
    %vm774 = vweird.f32 %v768
    %vm775 = vmor %vm773, %vm774
    %v776 = vsel %vm775, %v768, %v772
    %v777 = vand.u32 2147483647, %v764
    %vm778 = vcmp.eq.f32.partialorder %v777, 8.507059e+37
    %v779 = vand.u32 %v764, 2147483648
    %v780 = vor.u32 1.1754944e-38, %v779
    %v781 = vsel %vm778, %v780, %v776
    %v782 = vmul.f32 %v759, %v781
    %v783 = vrcp.pop %v767
    %v784 = vmul.f32 %v767, %v783
    %v785 = vsub.f32 1.0, %v784
    %v786 = vmul.f32 %v783, %v785
    %v787 = vadd.f32 %v783, %v786
    %vm788 = vweird.f32 %v767
    %vm789 = vweird.f32 %v783
    %vm790 = vmor %vm788, %vm789
    %v791 = vsel %vm790, %v783, %v787
    %v792 = vand.u32 2147483647, %v767
    %vm793 = vcmp.eq.f32.partialorder %v792, 8.507059e+37
    %v794 = vand.u32 %v767, 2147483648
    %v795 = vor.u32 1.1754944e-38, %v794
    %v796 = vsel %vm793, %v795, %v791
    %v797 = vmul.f32 %v761, %v796
    %v798 = vpack.c.bf16 %v782, %v782
    %v799 = vpack.c.bf16 %v797, %v797
    %800 = vrot.lane.b32.xlu0 %v201, 40
    %v801 = vpop.permute.xlu0 %800
    %v803 = vsel %vm204, %v798, 0
    %v806 = vsel %vm313, %v801, 0
    %808 = vmatpush.bf16.msra.mxu0 0
    %809 = vmatpush.bf16.msra.mxu0 0
    %810 = vmatpush.bf16.msra.mxu0 0
    %811 = vmatpush.bf16.msra.mxu0 0
    %812 = vmatpush.bf16.msra.mxu0 0
    %813 = vmatpush.bf16.msra.mxu0 0
    %814 = vmatpush.bf16.msra.mxu0 0
    %815 = vmatpush.bf16.msra.mxu0 %v806
    %816 = vmatmul.bf16.gmra.mxu0 %v803
    %v817 = vpop.f32.mrf.mxu0
    %v818 = vadd.f32 0.0, %v817
    %v819 = vpop.f32.mrf.mxu0
    %820 = vdwg.mxu0
    %821 = vrot.lane.b32.xlu0 %v226, 40
    %v822 = vpop.permute.xlu0 %821
    %v824 = vsel %vm204, %v799, 0
    %v827 = vsel %vm313, %v822, 0
    %829 = vmatpush.bf16.msra.mxu0 0
    %830 = vmatpush.bf16.msra.mxu0 0
    %831 = vmatpush.bf16.msra.mxu0 0
    %832 = vmatpush.bf16.msra.mxu0 0
    %833 = vmatpush.bf16.msra.mxu0 0
    %834 = vmatpush.bf16.msra.mxu0 0
    %835 = vmatpush.bf16.msra.mxu0 0
    %836 = vmatpush.bf16.msra.mxu0 %v827
    %837 = vmatmul.bf16.gmra.mxu0 %v824
    %v838 = vpop.f32.mrf.mxu0
    %v839 = vadd.f32 0.0, %v838
    %v840 = vpop.f32.mrf.mxu0
    %841 = vdwg.mxu0
    %v842 = vpack.c.bf16 %v839, %v818
    %v844 = vsel %vm204, %v842, 0
    %v847 = vsel %vm313, %v198, 0
    %849 = vmatpush.bf16.msra.mxu0 0
    %850 = vmatpush.bf16.msra.mxu0 0
    %851 = vmatpush.bf16.msra.mxu0 0
    %852 = vmatpush.bf16.msra.mxu0 0
    %853 = vmatpush.bf16.msra.mxu0 0
    %854 = vmatpush.bf16.msra.mxu0 0
    %855 = vmatpush.bf16.msra.mxu0 0
    %856 = vmatpush.bf16.msra.mxu0 %v847
    %857 = vmatmul.bf16.gmra.mxu0 %v844
    %v858 = vpop.f32.mrf.mxu0
    %v859 = vadd.f32 0.0, %v858
    %v860 = vpop.f32.mrf.mxu0
    %v861 = vadd.f32 0.0, %v860
    %862 = vdwg.mxu0
    %v863 = vadd.f32 %v698, %v859
    %v864 = vadd.f32 %v699, %v861
    %v865 = vld [vmem:[%s7] sm:$0x1]
    %v867 = vperm.slane %v865, 0
    %v869 = vadd.f32 %v863, %v867
    %v870 = vadd.f32 %v864, %v867
    %v871 = vadd.f32 %v869, %v151
    %v872 = vadd.f32 %v870, %v152
    %v873 = vld [vmem:[%s8] sm:$0x1]
    %v874 = vld [vmem:[%s9] sm:$0x1]
    %v875 = vsel %vm91, %v871, 0.0
    %876 = vadd.xlane.f32.xlu0 %v875
    %v877 = vpop.xlane.xlu0 %876
    %v878 = vsel %vm91, %v872, 0.0
    %879 = vadd.xlane.f32.xlu0 %v878
    %v880 = vpop.xlane.xlu0 %879
    %v881 = vmul.f32 %v877, %v104
    %v882 = vmul.f32 %v880, %v104
    %v883 = vsub.f32 %v871, %v881
    %v884 = vsub.f32 %v872, %v882
    %v885 = vmul.f32 %v883, %v883
    %v886 = vmul.f32 %v884, %v884
    %v887 = vsel %vm91, %v885, 0.0
    %888 = vadd.xlane.f32.xlu0 %v887
    %v889 = vpop.xlane.xlu0 %888
    %v890 = vsel %vm91, %v886, 0.0
    %891 = vadd.xlane.f32.xlu0 %v890
    %v892 = vpop.xlane.xlu0 %891
    %v893 = vmul.f32 %v889, %v104
    %v894 = vmul.f32 %v892, %v104
    %v895 = vadd.f32 %v893, 1e-12
    %v896 = vadd.f32 %v894, 1e-12
    %v897 = vrsqrt.pop %v895
    %v898 = vmul.f32 %v897, %v895
    %v899 = vmul.f32 %v898, %v897
    %v900 = vmul.f32 0.5, %v899
    %v901 = vsub.f32 1.5, %v900
    %v902 = vmul.f32 %v897, %v901
    %vm903 = vweird.f32 %v895
    %vm904 = vweird.f32 %v897
    %vm905 = vmor %vm903, %vm904
    %v906 = vsel %vm905, %v897, %v902
    %v907 = vrsqrt.pop %v896
    %v908 = vmul.f32 %v907, %v896
    %v909 = vmul.f32 %v908, %v907
    %v910 = vmul.f32 0.5, %v909
    %v911 = vsub.f32 1.5, %v910
    %v912 = vmul.f32 %v907, %v911
    %vm913 = vweird.f32 %v896
    %vm914 = vweird.f32 %v907
    %vm915 = vmor %vm913, %vm914
    %v916 = vsel %vm915, %v907, %v912
    %v917 = vmul.f32 %v883, %v906
    %v918 = vmul.f32 %v884, %v916
    %v920 = vperm.slane %v873, 0
    %v922 = vmul.f32 %v917, %v920
    %v923 = vmul.f32 %v918, %v920
    %v925 = vperm.slane %v874, 0
    %v927 = vadd.f32 %v922, %v925
    %v928 = vadd.f32 %v923, %v925
    %v929 = vpack.c.bf16 %v928, %v927
    %v930 = vld [vmem:[#allocation5] sm:$0xf]
    %v931 = vld [vmem:[#allocation5 + $0x4] sm:$0xf]
    %v932 = vld [vmem:[#allocation5 + $0x8] sm:$0xf]
    %v933 = vld [vmem:[#allocation5 + $0xc] sm:$0xf]
    %v934 = vld [vmem:[%s11] sm:$0x1]
    %v936 = vperm.slane %v934, 0
    %v942 = vunpack.c.l.b16 %v930
    %v943 = vunpack.c.l.b16 %v931
    %v944 = vunpack.c.l.b16 %v932
    %v945 = vunpack.c.l.b16 %v933
    %v946 = vpack.c.b16 %v943, %v942
    %v947 = vpack.c.b16 %v945, %v944
    %v951 = vsel %vm91, %v929, 0
    %953 = vmatpush.bf16.msra.mxu0 0
    %954 = vmatpush.bf16.msra.mxu0 0
    %955 = vmatpush.bf16.msra.mxu0 0
    %956 = vmatpush.bf16.msra.mxu0 0
    %957 = vmatpush.bf16.msra.mxu0 0
    %958 = vmatpush.bf16.msra.mxu0 0
    %959 = vmatpush.bf16.msra.mxu0 %v947
    %960 = vmatpush.bf16.msra.mxu0 %v946
    %961 = vmatmul.bf16.gmra.mxu0 %v951
    %v962 = vpop.f32.mrf.mxu0
    %v963 = vadd.f32 %v936, %v962
    %v964 = vpop.f32.mrf.mxu0
    %v965 = vadd.f32 %v936, %v964
    %966 = vdwg.mxu0
    %v967 = vmul.f32 %v963, 0.5
    %v968 = vmul.f32 %v965, 0.5
    %v969 = vmul.f32 %v963, 0.70710677
    %v970 = vmul.f32 %v965, 0.70710677
    %v971 = vmul.f32 %v969, %v969
    %v972 = vmin.f32 16.0, %v971
    %v973 = vmul.f32 %v972, 2.1237322e-06
    %v974 = vadd.f32 %v973, 0.00028619796
    %v975 = vmul.f32 %v972, %v974
    %v976 = vadd.f32 %v975, 0.0036580483
    %v977 = vmul.f32 %v972, %v976
    %v978 = vadd.f32 %v977, 0.05243302
    %v979 = vmul.f32 %v972, %v978
    %v980 = vadd.f32 %v979, 0.18741608
    %v981 = vmul.f32 %v972, %v980
    %v982 = vadd.f32 %v981, 1.1283791
    %v983 = vmul.f32 %v969, %v982
    %v984 = vmul.f32 %v972, 3.8918573e-05
    %v985 = vadd.f32 %v984, 0.001143296
    %v986 = vmul.f32 %v972, %v985
    %v987 = vadd.f32 %v986, 0.014752088
    %v988 = vmul.f32 %v972, %v987
    %v989 = vadd.f32 %v988, 0.112945676
    %v990 = vmul.f32 %v972, %v989
    %v991 = vadd.f32 %v990, 0.4994258
    %v992 = vmul.f32 %v972, %v991
    %v993 = vadd.f32 %v992, 1.0
    %v994 = vrcp.pop %v993
    %v995 = vmul.f32 %v993, %v994
    %v996 = vsub.f32 1.0, %v995
    %v997 = vmul.f32 %v994, %v996
    %v998 = vadd.f32 %v994, %v997
    %vm999 = vweird.f32 %v993
    %vm1000 = vweird.f32 %v994
    %vm1001 = vmor %vm999, %vm1000
    %v1002 = vsel %vm1001, %v994, %v998
    %v1003 = vand.u32 2147483647, %v993
    %vm1004 = vcmp.eq.f32.partialorder %v1003, 8.507059e+37
    %v1005 = vand.u32 %v993, 2147483648
    %v1006 = vor.u32 1.1754944e-38, %v1005
    %v1007 = vsel %vm1004, %v1006, %v1002
    %v1008 = vmul.f32 %v983, %v1007
    %v1009 = vmin.f32 %v1008, 1.0
    %v1010 = vmax.f32 %v1009, -1.0
    %v1011 = vmul.f32 %v970, %v970
    %v1012 = vmin.f32 16.0, %v1011
    %v1013 = vmul.f32 %v1012, 2.1237322e-06
    %v1014 = vadd.f32 %v1013, 0.00028619796
    %v1015 = vmul.f32 %v1012, %v1014
    %v1016 = vadd.f32 %v1015, 0.0036580483
    %v1017 = vmul.f32 %v1012, %v1016
    %v1018 = vadd.f32 %v1017, 0.05243302
    %v1019 = vmul.f32 %v1012, %v1018
    %v1020 = vadd.f32 %v1019, 0.18741608
    %v1021 = vmul.f32 %v1012, %v1020
    %v1022 = vadd.f32 %v1021, 1.1283791
    %v1023 = vmul.f32 %v970, %v1022
    %v1024 = vmul.f32 %v1012, 3.8918573e-05
    %v1025 = vadd.f32 %v1024, 0.001143296
    %v1026 = vmul.f32 %v1012, %v1025
    %v1027 = vadd.f32 %v1026, 0.014752088
    %v1028 = vmul.f32 %v1012, %v1027
    %v1029 = vadd.f32 %v1028, 0.112945676
    %v1030 = vmul.f32 %v1012, %v1029
    %v1031 = vadd.f32 %v1030, 0.4994258
    %v1032 = vmul.f32 %v1012, %v1031
    %v1033 = vadd.f32 %v1032, 1.0
    %v1034 = vrcp.pop %v1033
    %v1035 = vmul.f32 %v1033, %v1034
    %v1036 = vsub.f32 1.0, %v1035
    %v1037 = vmul.f32 %v1034, %v1036
    %v1038 = vadd.f32 %v1034, %v1037
    %vm1039 = vweird.f32 %v1033
    %vm1040 = vweird.f32 %v1034
    %vm1041 = vmor %vm1039, %vm1040
    %v1042 = vsel %vm1041, %v1034, %v1038
    %v1043 = vand.u32 2147483647, %v1033
    %vm1044 = vcmp.eq.f32.partialorder %v1043, 8.507059e+37
    %v1045 = vand.u32 %v1033, 2147483648
    %v1046 = vor.u32 1.1754944e-38, %v1045
    %v1047 = vsel %vm1044, %v1046, %v1042
    %v1048 = vmul.f32 %v1023, %v1047
    %v1049 = vmin.f32 %v1048, 1.0
    %v1050 = vmax.f32 %v1049, -1.0
    %v1051 = vadd.f32 %v1010, 1.0
    %v1052 = vadd.f32 %v1050, 1.0
    %v1053 = vmul.f32 %v967, %v1051
    %v1054 = vmul.f32 %v968, %v1052
    %v1055 = vpack.c.bf16 %v1054, %v1053
    %v1056 = vld [vmem:[%s12] sm:$0xf]
    %v1057 = vld [vmem:[%s12 + $0x4] sm:$0xf]
    %v1058 = vld [vmem:[%s12 + $0x8] sm:$0xf]
    %v1059 = vld [vmem:[%s12 + $0xc] sm:$0xf]
    %v1060 = vld [vmem:[%s12 + $0x10] sm:$0xf]
    %v1061 = vld [vmem:[%s12 + $0x14] sm:$0xf]
    %v1062 = vld [vmem:[%s12 + $0x18] sm:$0xf]
    %v1063 = vld [vmem:[%s12 + $0x1c] sm:$0xf]
    %v1064 = vld [vmem:[%s13] sm:$0x1]
    %v1066 = vperm.slane %v1064, 0
    %v1076 = vunpack.c.l.b16 %v1056
    %v1077 = vunpack.c.l.b16 %v1057
    %v1078 = vunpack.c.l.b16 %v1058
    %v1079 = vunpack.c.l.b16 %v1059
    %v1080 = vunpack.c.l.b16 %v1060
    %v1081 = vunpack.c.l.b16 %v1061
    %v1082 = vunpack.c.l.b16 %v1062
    %v1083 = vunpack.c.l.b16 %v1063
    %v1084 = vpack.c.b16 %v1077, %v1076
    %v1085 = vpack.c.b16 %v1079, %v1078
    %v1086 = vpack.c.b16 %v1081, %v1080
    %v1087 = vpack.c.b16 %v1083, %v1082
    %vm1092 = vcmask 523264
    %v1094 = vsel %vm1092, %v1055, 0
    %1096 = vmatpush.bf16.msra.mxu0 0
    %1097 = vmatpush.bf16.msra.mxu0 0
    %1098 = vmatpush.bf16.msra.mxu0 0
    %1099 = vmatpush.bf16.msra.mxu0 0
    %1100 = vmatpush.bf16.msra.mxu0 %v1087
    %1101 = vmatpush.bf16.msra.mxu0 %v1086
    %1102 = vmatpush.bf16.msra.mxu0 %v1085
    %1103 = vmatpush.bf16.msra.mxu0 %v1084
    %1104 = vmatmul.bf16.gmra.mxu0 %v1094
    %v1105 = vpop.f32.mrf.mxu0
    %v1106 = vadd.f32 %v1066, %v1105
    %v1107 = vpop.f32.mrf.mxu0
    %v1108 = vadd.f32 %v1066, %v1107
    %1109 = vdwg.mxu0
    %v1110 = vadd.f32 %v1106, %v927
    %v1111 = vadd.f32 %v1108, %v928
    %v1112 = vld [vmem:[%s14] sm:$0x1]
    %v1113 = vld [vmem:[%s15] sm:$0x1]
    %v1114 = vsel %vm91, %v1110, 0.0
    %1115 = vadd.xlane.f32.xlu0 %v1114
    %v1116 = vpop.xlane.xlu0 %1115
    %v1117 = vsel %vm91, %v1111, 0.0
    %1118 = vadd.xlane.f32.xlu0 %v1117
    %v1119 = vpop.xlane.xlu0 %1118
    %v1120 = vmul.f32 %v1116, %v104
    %v1121 = vmul.f32 %v1119, %v104
    %v1122 = vsub.f32 %v1110, %v1120
    %v1123 = vsub.f32 %v1111, %v1121
    %v1124 = vmul.f32 %v1122, %v1122
    %v1125 = vmul.f32 %v1123, %v1123
    %v1126 = vsel %vm91, %v1124, 0.0
    %1127 = vadd.xlane.f32.xlu0 %v1126
    %v1128 = vpop.xlane.xlu0 %1127
    %v1129 = vsel %vm91, %v1125, 0.0
    %1130 = vadd.xlane.f32.xlu0 %v1129
    %v1131 = vpop.xlane.xlu0 %1130
    %v1132 = vmul.f32 %v1128, %v104
    %v1133 = vmul.f32 %v1131, %v104
    %v1134 = vadd.f32 %v1132, 1e-12
    %v1135 = vadd.f32 %v1133, 1e-12
    %v1136 = vrsqrt.pop %v1134
    %v1137 = vmul.f32 %v1136, %v1134
    %v1138 = vmul.f32 %v1137, %v1136
    %v1139 = vmul.f32 0.5, %v1138
    %v1140 = vsub.f32 1.5, %v1139
    %v1141 = vmul.f32 %v1136, %v1140
    %vm1142 = vweird.f32 %v1134
    %vm1143 = vweird.f32 %v1136
    %vm1144 = vmor %vm1142, %vm1143
    %v1145 = vsel %vm1144, %v1136, %v1141
    %v1146 = vrsqrt.pop %v1135
    %v1147 = vmul.f32 %v1146, %v1135
    %v1148 = vmul.f32 %v1147, %v1146
    %v1149 = vmul.f32 0.5, %v1148
    %v1150 = vsub.f32 1.5, %v1149
    %v1151 = vmul.f32 %v1146, %v1150
    %vm1152 = vweird.f32 %v1135
    %vm1153 = vweird.f32 %v1146
    %vm1154 = vmor %vm1152, %vm1153
    %v1155 = vsel %vm1154, %v1146, %v1151
    %v1156 = vmul.f32 %v1122, %v1145
    %v1157 = vmul.f32 %v1123, %v1155
    %v1159 = vperm.slane %v1112, 0
    %v1161 = vmul.f32 %v1156, %v1159
    %v1162 = vmul.f32 %v1157, %v1159
    %v1164 = vperm.slane %v1113, 0
    %v1166 = vadd.f32 %v1161, %v1164
    %v1167 = vadd.f32 %v1162, %v1164
    %1168 = vst.msk [vmem:[#allocation7] sm:$0xff] %vm91, %v1166
    %1169 = vst.msk [vmem:[#allocation7 + $0x8] sm:$0xff] %vm91, %v1167
    // Predicated region
    $region74: #{tpu_custom_call.1} parent=1 // pred_check
      _
    $region75: #{tpu_custom_call.1} parent=1 // pred_check_branch
      %1171 = sbr.rel (0) target = $region77
    $region76: #{tpu_custom_call.1} parent=1 // pred_region
      %1173 = vsyncadd [#allocation4], 0
      %s1174 = sshll.u32 [#allocation7], 4
      %s1175 = int_to_ptr.vmem [resolvable:$true] %s1174
      %s1176 = sshll.u32 %s16, 4
      %s1177 = int_to_ptr.hbm [resolvable:$true] %s1176
      %1182 = dma.vmem_to_hbm [thread:$0]  %s1175, 256, %s1177, [#allocation4], 128, 128, 8
    $region77: #{tpu_custom_call.1} parent=1 // pred_fallthru
      _
    // Predicated region
    $region78: #{tpu_custom_call.1} parent=1 // pred_check
      _
    $region79: #{tpu_custom_call.1} parent=1 // pred_check_branch
      %1184 = sbr.rel (0) target = $region81
    $region80: #{tpu_custom_call.1} parent=1 // pred_region
      %1186 = dma.done [#allocation4], 256
    $region81: #{tpu_custom_call.1} parent=1 // pred_fallthru
      _
    %1187 = vsyncpa [#allocation3], 1
    %1188 = vsyncpa [#allocation6], 1
    %1189 = vsyncpa [#allocation4], 1

</llo_original>
